<compile_context>
chip_gen: v6e
topology: v6e:2x2x1
jax: 0.10.0
libtpu: 0.0.40
codegen_flags: <defaults>
</compile_context>

<pallas_src>
import functools

import jax
import jax.numpy as jnp
from jax.experimental import pallas as pl
from jax.experimental.pallas import tpu as pltpu

# ----------------------------- problem sizes -----------------------------
B = 256          # batch
RES = 64         # opt.resSize
ATT = 64         # opt.attSize
NDH = 2 * RES    # opt.ndh (reparameter broadcast requires ndh == 2*resSize)
NCLASS = 16      # opt.nclass_seen
OUT_W = 128      # packed, lane-dense output width (>= NCLASS + 1)


# --------------------------- device heuristics ----------------------------
def _device_kind():
    try:
        return jax.devices()[0].device_kind.lower()
    except Exception:
        return ""


def _pick_tile(batch):
    """One grid step per TensorCore: 2 tiles on v7x (2 TCs), 1 otherwise."""
    kind = _device_kind()
    if "v7" in kind and batch % 16 == 0:
        return batch // 2
    return batch


def _elementwise_dtype():
    """bf16 elementwise on v6e/v7x (bf16 VALU/EUP); f32 elsewhere (v5e has none)."""
    kind = _device_kind()
    if "v6" in kind or "v7" in kind:
        return jnp.bfloat16
    return jnp.float32


# ------------------------------- kernel ----------------------------------
def critic_kernel(xa_ref, noise_ref, w1_ref, b1_ref, w2c_ref, b2c_ref, out_ref,
                  *, res_size, nclass, compute_dtype, use_noise):
    # ---- stage 1: fc1(cat([x, att])) + LeakyReLU(0.2), f32 accumulation ----
    h = jnp.dot(xa_ref[...], w1_ref[...], preferred_element_type=jnp.float32)
    h = h + b1_ref[...]
    h = jnp.where(h > 0, h, 0.2 * h)                       # (tile, NDH) f32

    # one lane-index iota, reused for the class mask below when NDH == OUT_W
    col = jax.lax.broadcasted_iota(jnp.int32, h.shape, dimension=1)

    # ---- reparameterize without lane-slicing h -----------------------------
    #   lanes [0, res_size)   -> mus
    #   lanes [res_size, ndh) -> noise * sigmoid(std_preact)  (= noise * stds)
    if use_noise:
        hc = h.astype(compute_dtype)
        noise = noise_ref[...].astype(compute_dtype)
        lhs2 = jnp.where(col < res_size, hc, noise * jax.nn.sigmoid(hc))
    else:
        # train_G: fc2 acts on mus only; the std lanes hit zero columns of the
        # packed weight, so pass h straight through (no sigmoid / noise work).
        lhs2 = h.astype(compute_dtype)

    # ---- stage 2: fused fc2 + classifier, single MXU pass ------------------
    # packed rhs: cols [0, nclass) = classifier, col nclass = fc2, rest zero
    out = jnp.dot(lhs2.astype(w2c_ref.dtype), w2c_ref[...],
                  preferred_element_type=jnp.float32)
    out = out + b2c_ref[...]                               # (tile, OUT_W) f32

    # ---- masked, stable log_softmax over the class columns only (f32) ------
    if out.shape == h.shape:
        ocol = col
    else:
        ocol = jax.lax.broadcasted_iota(jnp.int32, out.shape, dimension=1)
    is_class = ocol < nclass
    masked = jnp.where(is_class, out, jnp.float32(-1e30))
    m = jnp.max(masked, axis=-1, keepdims=True)
    shifted = masked - m
    lse = jnp.log(jnp.sum(jnp.exp(shifted), axis=-1, keepdims=True))

    # packed, lane-dense store: [ log-probs | dis | zero padding ]
    out_ref[...] = jnp.where(is_class, shifted - lse, out)


# --------------------------- one-time weight packing -----------------------
def pack_critic_params(params, *, train_G=False, out_w=OUT_W):
    """Pack PyTorch-layout params once; reuse across every critic forward."""
    w1, b1, w2, b2, wc, bc = params          # PyTorch (out_features, in_features)
    ndh = b1.shape[0]
    res = wc.shape[1]
    nclass = bc.shape[0]
    assert ndh == 2 * res, "reparameter() broadcast requires ndh == 2*resSize"
    assert nclass + 1 <= out_w

    w1_t = w1.T.astype(jnp.bfloat16)                       # (res+att, ndh)
    b1_2d = b1.reshape(1, ndh).astype(jnp.float32)

    w2_col = w2[0]                                         # (res,)
    w2c = jnp.zeros((ndh, out_w), jnp.float32)
    w2c = w2c.at[:res, :nclass].set(wc.T)                  # classifier on mus
    w2c = w2c.at[:res, nclass].set(w2_col)                 # fc2 on mus
    if not train_G:                                        # + fc2 on noise*stds
        w2c = w2c.at[res:, nclass].set(w2_col)             #   => fc2(enc)
    w2c = w2c.astype(jnp.bfloat16)

    b2c = jnp.zeros((1, out_w), jnp.float32)
    b2c = b2c.at[0, :nclass].set(bc)
    b2c = b2c.at[0, nclass].set(b2[0])
    return (w1_t, b1_2d, w2c, b2c)


# ------------------------------- forward ----------------------------------
def mlp_critic_forward(x, att, noise, packed, *, nclass, train_G=False,
                       tile_b=None, out_w=OUT_W, elem_dtype=jnp.float32):
    """x: (B, res), att: (B, att), noise: (B, res) ~ N(0,1) (randn_like(mus)).

    `packed` is the result of pack_critic_params(); call inside jit so the
    remaining activation prep fuses with surrounding ops.
    """
    w1_t, b1_2d, w2c, b2c = packed
    batch, res = x.shape
    att_size = att.shape[1]
    in_dim = w1_t.shape[0]
    ndh = w1_t.shape[1]

    assert in_dim == res + att_size
    assert ndh == 2 * res, "reparameter() broadcast requires ndh == 2*resSize"
    assert noise.shape == (batch, res)
    assert nclass + 1 <= out_w
    if tile_b is None:
        tile_b = batch
    assert batch % tile_b == 0 and tile_b % 8 == 0, \
        "pad the batch so it splits into tiles that are multiples of 8"

    # lane-dense activations: cat([x, att]) once; noise placed in the std
    # lanes and shipped as bf16 (half the DMA bytes of the previous f32 slab).
    xa = jnp.concatenate([x, att], axis=1).astype(jnp.bfloat16)       # (B, in)
    noise_full = jnp.concatenate(
        [jnp.zeros((batch, res), noise.dtype), noise],
        axis=1).astype(jnp.bfloat16)                                   # (B, ndh)

    n_tiles = batch // tile_b
    flops = 2 * batch * in_dim * ndh + 2 * batch * ndh * out_w
    bytes_accessed = (xa.size * 2 + noise_full.size * 2 + w1_t.size * 2
                      + b1_2d.size * 4 + w2c.size * 2 + b2c.size * 4
                      + batch * out_w * 4)

    packed_out = pl.pallas_call(
        functools.partial(critic_kernel, res_size=res, nclass=nclass,
                          compute_dtype=elem_dtype, use_noise=not train_G),
        grid=(n_tiles,),
        in_specs=[
            pl.BlockSpec((tile_b, in_dim), lambda i: (i, 0)),   # xa
            pl.BlockSpec((tile_b, ndh), lambda i: (i, 0)),      # noise (bf16)
            pl.BlockSpec((in_dim, ndh), lambda i: (0, 0)),      # w1
            pl.BlockSpec((1, ndh), lambda i: (0, 0)),           # b1
            pl.BlockSpec((ndh, out_w), lambda i: (0, 0)),       # fused w2|wc
            pl.BlockSpec((1, out_w), lambda i: (0, 0)),         # fused b2|bc
        ],
        out_specs=pl.BlockSpec((tile_b, out_w), lambda i: (i, 0)),
        out_shape=jax.ShapeDtypeStruct((batch, out_w), jnp.float32),
        compiler_params=pltpu.CompilerParams(
            dimension_semantics=("parallel",)),
        cost_estimate=pl.CostEstimate(
            flops=flops,
            transcendentals=batch * (res + out_w + 1),
            bytes_accessed=bytes_accessed),
    )(xa, noise_full, w1_t, b1_2d, w2c, b2c)

    pred = packed_out[:, :nclass]                # log_softmax(classifier(mus))
    dis = packed_out[:, nclass:nclass + 1]       # fc2(enc)  (fc2(mus) if train_G)
    return dis, pred


# ----------------------- pure-JAX reference (for checks) -------------------
def mlp_critic_reference(x, att, noise, params, *, train_G=False):
    w1, b1, w2, b2, wc, bc = params
    res = x.shape[1]
    mid = jnp.concatenate([x, att], axis=1)
    h = jnp.dot(mid.astype(jnp.bfloat16), w1.T.astype(jnp.bfloat16),
                preferred_element_type=jnp.float32) + b1
    h = jnp.where(h > 0, h, 0.2 * h)
    mus, stds = h[:, :res], jax.nn.sigmoid(h[:, res:])
    enc = noise * stds + mus
    lhs = mus if train_G else enc
    dis = jnp.dot(lhs.astype(jnp.bfloat16), w2.T.astype(jnp.bfloat16),
                  preferred_element_type=jnp.float32) + b2
    logits = jnp.dot(mus.astype(jnp.bfloat16), wc.T.astype(jnp.bfloat16),
                     preferred_element_type=jnp.float32) + bc
    return dis, jax.nn.log_softmax(logits, axis=1)


def init_params(key):
    """weights_init: Linear.weight ~ N(0, 0.02), Linear.bias = 0."""
    k1, k2, k3 = jax.random.split(key, 3)
    w1 = 0.02 * jax.random.normal(k1, (NDH, RES + ATT), jnp.float32)
    b1 = jnp.zeros((NDH,), jnp.float32)
    w2 = 0.02 * jax.random.normal(k2, (1, RES), jnp.float32)
    b2 = jnp.zeros((1,), jnp.float32)
    wc = 0.02 * jax.random.normal(k3, (NCLASS, RES), jnp.float32)
    bc = jnp.zeros((NCLASS,), jnp.float32)
    return (w1, b1, w2, b2, wc, bc)


if __name__ == "__main__":
    key = jax.random.PRNGKey(0)
    kx, ka, kn, kp = jax.random.split(key, 4)

    x = jax.random.normal(kx, (B, RES), jnp.float32)
    att = jax.random.normal(ka, (B, ATT), jnp.float32)
    noise = jax.random.normal(kn, (B, RES), jnp.float32)   # randn_like(mus)
    params = init_params(kp)

    # one-time packing + per-generation tile / dtype choices (cached across calls)
    packed = pack_critic_params(params, train_G=False)
    tile_b = _pick_tile(B)
    elem_dtype = _elementwise_dtype()

    fwd = jax.jit(functools.partial(
        mlp_critic_forward, nclass=NCLASS, train_G=False,
        tile_b=tile_b, out_w=OUT_W, elem_dtype=elem_dtype))

    dis_out, pred = jax.block_until_ready(fwd(x, att, noise, packed))

    assert dis_out.shape == (B, 1)
    assert pred.shape == (B, NCLASS)
    # pred rows are log-probabilities (logsumexp == 0)
    assert jnp.allclose(jnp.exp(pred).sum(axis=1), 1.0, atol=1e-5)
    # matches the plain-XLA reference (bf16 matmul operands, f32 accumulation)
    dis_ref, pred_ref = mlp_critic_reference(x, att, noise, params)
    assert jnp.allclose(dis_out, dis_ref, atol=2e-2, rtol=2e-2)
    assert jnp.allclose(pred, pred_ref, atol=2e-2, rtol=2e-2)

    print("KERNEL_OK")
</pallas_src>

<mosaic_0001>
module attributes {stable_mosaic.version = 11 : i64} {
  func.func @critic_kernel(%arg0: i32, %arg1: memref<256x128xbf16, #tpu.memory_space<vmem>>, %arg2: memref<256x128xbf16, #tpu.memory_space<vmem>>, %arg3: memref<128x128xbf16, #tpu.memory_space<vmem>>, %arg4: memref<1x128xf32, #tpu.memory_space<vmem>>, %arg5: memref<128x128xbf16, #tpu.memory_space<vmem>>, %arg6: memref<1x128xf32, #tpu.memory_space<vmem>>, %arg7: memref<256x128xf32, #tpu.memory_space<vmem>>) attributes {dimension_semantics = [#tpu.dimension_semantics<parallel>], iteration_bounds = array<i64: 1>, scalar_prefetch = 0 : i64, scratch_operands = 0 : i64, tpu.core_type = #tpu.core_type<tc>, window_params = [{transform_indices = @transform_0, window_bounds = array<i64: 256, 128>}, {transform_indices = @transform_1, window_bounds = array<i64: 256, 128>}, {pipeline_mode = #tpu.pipeline_mode<synchronous>, transform_indices = @transform_2, window_bounds = array<i64: 128, 128>}, {pipeline_mode = #tpu.pipeline_mode<synchronous>, transform_indices = @transform_3, window_bounds = array<i64: 1, 128>}, {pipeline_mode = #tpu.pipeline_mode<synchronous>, transform_indices = @transform_4, window_bounds = array<i64: 128, 128>}, {pipeline_mode = #tpu.pipeline_mode<synchronous>, transform_indices = @transform_5, window_bounds = array<i64: 1, 128>}, {transform_indices = @transform_6, window_bounds = array<i64: 256, 128>}]} {
    %c0 = arith.constant 0 : index
    %c0_0 = arith.constant 0 : index
    %0 = vector.load %arg1[%c0, %c0_0] : memref<256x128xbf16, #tpu.memory_space<vmem>>, vector<256x128xbf16>
    %c0_1 = arith.constant 0 : index
    %c0_2 = arith.constant 0 : index
    %1 = vector.load %arg3[%c0_1, %c0_2] : memref<128x128xbf16, #tpu.memory_space<vmem>>, vector<128x128xbf16>
    %cst = arith.constant dense<0.000000e+00> : vector<256x128xf32>
    %2 = tpu.matmul %0, %1, %cst {dimension_numbers = #tpu.dot_dimension_numbers<[1], [0], [0], [1], [0, 0, 1, 1], [], []>} : vector<256x128xbf16>, vector<128x128xbf16>, vector<256x128xf32> -> vector<256x128xf32>
    %c0_3 = arith.constant 0 : index
    %c0_4 = arith.constant 0 : index
    %3 = vector.load %arg4[%c0_3, %c0_4] : memref<1x128xf32, #tpu.memory_space<vmem>>, vector<1x128xf32>
    %4 = vector.broadcast %3 : vector<1x128xf32> to vector<256x128xf32>
    %5 = arith.addf %2, %4 : vector<256x128xf32>
    %cst_5 = arith.constant 0.000000e+00 : f32
    %6 = vector.broadcast %cst_5 : f32 to vector<256x128xf32>
    %7 = arith.cmpf ogt, %5, %6 : vector<256x128xf32>
    %cst_6 = arith.constant 2.000000e-01 : f32
    %8 = vector.broadcast %cst_6 : f32 to vector<256x128xf32>
    %9 = arith.mulf %8, %5 : vector<256x128xf32>
    %10 = arith.select %7, %5, %9 : vector<256x128xi1>, vector<256x128xf32>
    %11 = tpu.iota {dimensions = array<i32: 1>} : vector<256x128xi32>
    %c0_7 = arith.constant 0 : index
    %c0_8 = arith.constant 0 : index
    %12 = vector.load %arg2[%c0_7, %c0_8] : memref<256x128xbf16, #tpu.memory_space<vmem>>, vector<256x128xbf16>
    %13 = arith.extf %12 : vector<256x128xbf16> to vector<256x128xf32>
    %c64_i32 = arith.constant 64 : i32
    %14 = vector.broadcast %c64_i32 : i32 to vector<256x128xi32>
    %15 = arith.cmpi slt, %11, %14 : vector<256x128xi32>
    %16 = arith.negf %10 : vector<256x128xf32>
    %17 = math.exp %16 : vector<256x128xf32>
    %cst_9 = arith.constant 1.000000e+00 : f32
    %18 = vector.broadcast %cst_9 : f32 to vector<256x128xf32>
    %19 = arith.addf %18, %17 : vector<256x128xf32>
    %20 = arith.divf %18, %19 : vector<256x128xf32>
    %21 = arith.mulf %13, %20 : vector<256x128xf32>
    %22 = arith.select %15, %10, %21 : vector<256x128xi1>, vector<256x128xf32>
    %23 = arith.truncf %22 : vector<256x128xf32> to vector<256x128xbf16>
    %c0_10 = arith.constant 0 : index
    %c0_11 = arith.constant 0 : index
    %24 = vector.load %arg5[%c0_10, %c0_11] : memref<128x128xbf16, #tpu.memory_space<vmem>>, vector<128x128xbf16>
    %cst_12 = arith.constant dense<0.000000e+00> : vector<256x128xf32>
    %25 = tpu.matmul %23, %24, %cst_12 {dimension_numbers = #tpu.dot_dimension_numbers<[1], [0], [0], [1], [0, 0, 1, 1], [], []>} : vector<256x128xbf16>, vector<128x128xbf16>, vector<256x128xf32> -> vector<256x128xf32>
    %c0_13 = arith.constant 0 : index
    %c0_14 = arith.constant 0 : index
    %26 = vector.load %arg6[%c0_13, %c0_14] : memref<1x128xf32, #tpu.memory_space<vmem>>, vector<1x128xf32>
    %27 = vector.broadcast %26 : vector<1x128xf32> to vector<256x128xf32>
    %28 = arith.addf %25, %27 : vector<256x128xf32>
    %c16_i32 = arith.constant 16 : i32
    %29 = vector.broadcast %c16_i32 : i32 to vector<256x128xi32>
    %30 = arith.cmpi slt, %11, %29 : vector<256x128xi32>
    %cst_15 = arith.constant -1.000000e+30 : f32
    %31 = vector.broadcast %cst_15 : f32 to vector<256x128xf32>
    %32 = arith.select %30, %28, %31 : vector<256x128xi1>, vector<256x128xf32>
    %cst_16 = arith.constant dense<0xFF800000> : vector<256xf32>
    %33 = vector.multi_reduction <maximumf>, %32, %cst_16 [1] : vector<256x128xf32> to vector<256xf32>
    %34 = vector.shape_cast %33 : vector<256xf32> to vector<256x1xf32>
    %35 = vector.broadcast %34 : vector<256x1xf32> to vector<256x128xf32>
    %36 = arith.subf %32, %35 : vector<256x128xf32>
    %37 = math.exp %36 : vector<256x128xf32>
    %cst_17 = arith.constant dense<0.000000e+00> : vector<256xf32>
    %38 = vector.multi_reduction <add>, %37, %cst_17 [1] : vector<256x128xf32> to vector<256xf32>
    %39 = vector.shape_cast %38 : vector<256xf32> to vector<256x1xf32>
    %40 = math.log %39 : vector<256x1xf32>
    %41 = vector.broadcast %40 : vector<256x1xf32> to vector<256x128xf32>
    %42 = arith.subf %36, %41 : vector<256x128xf32>
    %43 = arith.select %30, %42, %28 : vector<256x128xi1>, vector<256x128xf32>
    %c0_18 = arith.constant 0 : index
    %c0_19 = arith.constant 0 : index
    %44 = vector.load %arg7[%c0_18, %c0_19] : memref<256x128xf32, #tpu.memory_space<vmem>>, vector<256x128xf32>
    tpu.vector_store %arg7[%c0_18, %c0_19], %43 {strides = array<i32>} : memref<256x128xf32, #tpu.memory_space<vmem>>, vector<256x128xf32>,
    return
  }
  func.func @transform_0(%arg0: i32) -> (i32, i32) {
    %c0_i32 = arith.constant 0 : i32
    %c0_i32_0 = arith.constant 0 : i32
    return %arg0, %c0_i32 : i32, i32
  }
  func.func @transform_1(%arg0: i32) -> (i32, i32) {
    %c0_i32 = arith.constant 0 : i32
    %c0_i32_0 = arith.constant 0 : i32
    return %arg0, %c0_i32 : i32, i32
  }
  func.func @transform_2(%arg0: i32) -> (i32, i32) {
    %c0_i32 = arith.constant 0 : i32
    %c0_i32_0 = arith.constant 0 : i32
    %c0_i32_1 = arith.constant 0 : i32
    return %c0_i32, %c0_i32_0 : i32, i32
  }
  func.func @transform_3(%arg0: i32) -> (i32, i32) {
    %c0_i32 = arith.constant 0 : i32
    %c0_i32_0 = arith.constant 0 : i32
    %c0_i32_1 = arith.constant 0 : i32
    return %c0_i32, %c0_i32_0 : i32, i32
  }
  func.func @transform_4(%arg0: i32) -> (i32, i32) {
    %c0_i32 = arith.constant 0 : i32
    %c0_i32_0 = arith.constant 0 : i32
    %c0_i32_1 = arith.constant 0 : i32
    return %c0_i32, %c0_i32_0 : i32, i32
  }
  func.func @transform_5(%arg0: i32) -> (i32, i32) {
    %c0_i32 = arith.constant 0 : i32
    %c0_i32_0 = arith.constant 0 : i32
    %c0_i32_1 = arith.constant 0 : i32
    return %c0_i32, %c0_i32_0 : i32, i32
  }
  func.func @transform_6(%arg0: i32) -> (i32, i32) {
    %c0_i32 = arith.constant 0 : i32
    %c0_i32_0 = arith.constant 0 : i32
    return %arg0, %c0_i32 : i32, i32
  }
}

</mosaic_0001>

<llo_original>
// kernel: mlp_critic_forward.1
$region0: #{mlp_critic_forward.1}
  #allocation0 [shape = 'u32[]', space=smem, size = 0x4, offset = 0x4, fixed_abs, tag = 'smem constant byte address 0x4 - core index']
  #allocation1 [shape = 'u32[144,128]{1,0:T(1,128)}', space=vmem, size = 0x12000, scoped, tag = 'internal scratch']
  %s0 = inlined_call_operand.vmem [shape: bf16[256,128], index: 0, kind: input, shape index: {}]
  %s1 = inlined_call_operand.vmem [shape: bf16[256,128], index: 1, kind: input, shape index: {}]
  %s2 = inlined_call_operand.vmem [shape: bf16[128,128], index: 2, kind: input, shape index: {}]
  %s3 = inlined_call_operand.vmem [shape: f32[1,128], index: 3, kind: input, shape index: {}]
  %s4 = inlined_call_operand.vmem [shape: bf16[128,128], index: 4, kind: input, shape index: {}]
  %s5 = inlined_call_operand.vmem [shape: f32[1,128], index: 5, kind: input, shape index: {}]
  %s6 = inlined_call_operand.vmem [shape: f32[256,128], index: 6, kind: output, shape index: {}]
  %s7 = sld [smem:[#allocation0]]
  $region34: #{mlp_critic_forward.1} parent=0
    _
  %s9 = ssub.s32 1, %s7
  %s10 = scalar_select 0, %s9, %s7
  // Predicated region
  $region2: #{mlp_critic_forward.1} parent=0 // pred_check
    _
  $region3: #{mlp_critic_forward.1} parent=0 // pred_check_branch
    %12 = sbr.rel (0) target = $region5
  $region4: #{mlp_critic_forward.1} parent=0 // pred_region
    _
  $region5: #{mlp_critic_forward.1} parent=0 // pred_fallthru
    _
  // Predicated region
  $region6: #{mlp_critic_forward.1} parent=0 // pred_check
    _
  $region7: #{mlp_critic_forward.1} parent=0 // pred_check_branch
    %14 = sbr.rel (0) target = $region9
  $region8: #{mlp_critic_forward.1} parent=0 // pred_region
    _
  $region9: #{mlp_critic_forward.1} parent=0 // pred_fallthru
    _
  // Predicated region
  $region10: #{mlp_critic_forward.1} parent=0 // pred_check
    _
  $region11: #{mlp_critic_forward.1} parent=0 // pred_check_branch
    %16 = sbr.rel (0) target = $region13
  $region12: #{mlp_critic_forward.1} parent=0 // pred_region
    _
  $region13: #{mlp_critic_forward.1} parent=0 // pred_fallthru
    _
  // Predicated region
  $region14: #{mlp_critic_forward.1} parent=0 // pred_check
    _
  $region15: #{mlp_critic_forward.1} parent=0 // pred_check_branch
    %18 = sbr.rel (0) target = $region17
  $region16: #{mlp_critic_forward.1} parent=0 // pred_region
    _
  $region17: #{mlp_critic_forward.1} parent=0 // pred_fallthru
    _
  // Predicated region
  $region18: #{mlp_critic_forward.1} parent=0 // pred_check
    _
  $region19: #{mlp_critic_forward.1} parent=0 // pred_check_branch
    %20 = sbr.rel (0) target = $region21
  $region20: #{mlp_critic_forward.1} parent=0 // pred_region
    _
  $region21: #{mlp_critic_forward.1} parent=0 // pred_fallthru
    _
  // Predicated region
  $region22: #{mlp_critic_forward.1} parent=0 // pred_check
    _
  $region23: #{mlp_critic_forward.1} parent=0 // pred_check_branch
    %22 = sbr.rel (0) target = $region25
  $region24: #{mlp_critic_forward.1} parent=0 // pred_region
    _
  $region25: #{mlp_critic_forward.1} parent=0 // pred_fallthru
    _
  %v24 = vld [vmem:[%s0] sm:$0xf]
  %v25 = vld [vmem:[%s0 + $0x4] sm:$0xf]
  %v26 = vld [vmem:[%s0 + $0x8] sm:$0xf]
  %v27 = vld [vmem:[%s0 + $0xc] sm:$0xf]
  %v28 = vld [vmem:[%s0 + $0x10] sm:$0xf]
  %v29 = vld [vmem:[%s0 + $0x14] sm:$0xf]
  %v30 = vld [vmem:[%s0 + $0x18] sm:$0xf]
  %v31 = vld [vmem:[%s0 + $0x1c] sm:$0xf]
  %v32 = vld [vmem:[%s0 + $0x20] sm:$0xf]
  %v33 = vld [vmem:[%s0 + $0x24] sm:$0xf]
  %v34 = vld [vmem:[%s0 + $0x28] sm:$0xf]
  %v35 = vld [vmem:[%s0 + $0x2c] sm:$0xf]
  %v36 = vld [vmem:[%s0 + $0x30] sm:$0xf]
  %v37 = vld [vmem:[%s0 + $0x34] sm:$0xf]
  %v38 = vld [vmem:[%s0 + $0x38] sm:$0xf]
  %v39 = vld [vmem:[%s0 + $0x3c] sm:$0xf]
  %v40 = vld [vmem:[%s0 + $0x40] sm:$0xf]
  %v41 = vld [vmem:[%s0 + $0x44] sm:$0xf]
  %v42 = vld [vmem:[%s0 + $0x48] sm:$0xf]
  %v43 = vld [vmem:[%s0 + $0x4c] sm:$0xf]
  %v44 = vld [vmem:[%s0 + $0x50] sm:$0xf]
  %v45 = vld [vmem:[%s0 + $0x54] sm:$0xf]
  %v46 = vld [vmem:[%s0 + $0x58] sm:$0xf]
  %v47 = vld [vmem:[%s0 + $0x5c] sm:$0xf]
  %v48 = vld [vmem:[%s0 + $0x60] sm:$0xf]
  %v49 = vld [vmem:[%s0 + $0x64] sm:$0xf]
  %v50 = vld [vmem:[%s0 + $0x68] sm:$0xf]
  %v51 = vld [vmem:[%s0 + $0x6c] sm:$0xf]
  %v52 = vld [vmem:[%s0 + $0x70] sm:$0xf]
  %v53 = vld [vmem:[%s0 + $0x74] sm:$0xf]
  %v54 = vld [vmem:[%s0 + $0x78] sm:$0xf]
  %v55 = vld [vmem:[%s0 + $0x7c] sm:$0xf]
  %v56 = vld [vmem:[%s2] sm:$0xf]
  %v57 = vld [vmem:[%s2 + $0x4] sm:$0xf]
  %v58 = vld [vmem:[%s2 + $0x8] sm:$0xf]
  %v59 = vld [vmem:[%s2 + $0xc] sm:$0xf]
  %v60 = vld [vmem:[%s2 + $0x10] sm:$0xf]
  %v61 = vld [vmem:[%s2 + $0x14] sm:$0xf]
  %v62 = vld [vmem:[%s2 + $0x18] sm:$0xf]
  %v63 = vld [vmem:[%s2 + $0x1c] sm:$0xf]
  %v64 = vld [vmem:[%s2 + $0x20] sm:$0xf]
  %v65 = vld [vmem:[%s2 + $0x24] sm:$0xf]
  %v66 = vld [vmem:[%s2 + $0x28] sm:$0xf]
  %v67 = vld [vmem:[%s2 + $0x2c] sm:$0xf]
  %v68 = vld [vmem:[%s2 + $0x30] sm:$0xf]
  %v69 = vld [vmem:[%s2 + $0x34] sm:$0xf]
  %v70 = vld [vmem:[%s2 + $0x38] sm:$0xf]
  %v71 = vld [vmem:[%s2 + $0x3c] sm:$0xf]
  %v72 = vld [vmem:[%s3] sm:$0x1]
  %v74 = vlaneseq
  %v75 = vshrl.u32 %v74, 7
  %v76 = vsub.s32 0, %v75
  %v77 = vrot.slane %v72, %v76
  %v111 = vunpack.c.l.b16 %v24
  %v112 = vunpack.c.l.b16 %v25
  %v113 = vunpack.c.l.b16 %v26
  %v114 = vunpack.c.l.b16 %v27
  %v115 = vunpack.c.l.b16 %v28
  %v116 = vunpack.c.l.b16 %v29
  %v117 = vunpack.c.l.b16 %v30
  %v118 = vunpack.c.l.b16 %v31
  %v119 = vunpack.c.l.b16 %v32
  %v120 = vunpack.c.l.b16 %v33
  %v121 = vunpack.c.l.b16 %v34
  %v122 = vunpack.c.l.b16 %v35
  %v123 = vunpack.c.l.b16 %v36
  %v124 = vunpack.c.l.b16 %v37
  %v125 = vunpack.c.l.b16 %v38
  %v126 = vunpack.c.l.b16 %v39
  %v127 = vunpack.c.l.b16 %v40
  %v128 = vunpack.c.l.b16 %v41
  %v129 = vunpack.c.l.b16 %v42
  %v130 = vunpack.c.l.b16 %v43
  %v131 = vunpack.c.l.b16 %v44
  %v132 = vunpack.c.l.b16 %v45
  %v133 = vunpack.c.l.b16 %v46
  %v134 = vunpack.c.l.b16 %v47
  %v135 = vunpack.c.l.b16 %v48
  %v136 = vunpack.c.l.b16 %v49
  %v137 = vunpack.c.l.b16 %v50
  %v138 = vunpack.c.l.b16 %v51
  %v139 = vunpack.c.l.b16 %v52
  %v140 = vunpack.c.l.b16 %v53
  %v141 = vunpack.c.l.b16 %v54
  %v142 = vunpack.c.l.b16 %v55
  %v143 = vpack.c.b16 %v112, %v111
  %v144 = vpack.c.b16 %v114, %v113
  %v145 = vpack.c.b16 %v116, %v115
  %v146 = vpack.c.b16 %v118, %v117
  %v147 = vpack.c.b16 %v120, %v119
  %v148 = vpack.c.b16 %v122, %v121
  %v149 = vpack.c.b16 %v124, %v123
  %v150 = vpack.c.b16 %v126, %v125
  %v151 = vpack.c.b16 %v128, %v127
  %v152 = vpack.c.b16 %v130, %v129
  %v153 = vpack.c.b16 %v132, %v131
  %v154 = vpack.c.b16 %v134, %v133
  %v155 = vpack.c.b16 %v136, %v135
  %v156 = vpack.c.b16 %v138, %v137
  %v157 = vpack.c.b16 %v140, %v139
  %v158 = vpack.c.b16 %v142, %v141
  %v191 = vunpack.c.l.b16 %v56
  %v192 = vunpack.c.l.b16 %v57
  %v193 = vunpack.c.l.b16 %v58
  %v194 = vunpack.c.l.b16 %v59
  %v195 = vunpack.c.l.b16 %v60
  %v196 = vunpack.c.l.b16 %v61
  %v197 = vunpack.c.l.b16 %v62
  %v198 = vunpack.c.l.b16 %v63
  %v199 = vunpack.c.l.b16 %v64
  %v200 = vunpack.c.l.b16 %v65
  %v201 = vunpack.c.l.b16 %v66
  %v202 = vunpack.c.l.b16 %v67
  %v203 = vunpack.c.l.b16 %v68
  %v204 = vunpack.c.l.b16 %v69
  %v205 = vunpack.c.l.b16 %v70
  %v206 = vunpack.c.l.b16 %v71
  %v207 = vpack.c.b16 %v192, %v191
  %v208 = vpack.c.b16 %v194, %v193
  %v209 = vpack.c.b16 %v196, %v195
  %v210 = vpack.c.b16 %v198, %v197
  %v211 = vpack.c.b16 %v200, %v199
  %v212 = vpack.c.b16 %v202, %v201
  %v213 = vpack.c.b16 %v204, %v203
  %v214 = vpack.c.b16 %v206, %v205
  %223 = vmatprep.subr.bf16.mxu0 0
  %224 = vmatpush1.bf16.msra.mxu0 %v214
  %225 = vmatprep.subr.bf16.mxu0 0
  %226 = vmatpush1.bf16.msra.mxu0 %v213
  %227 = vmatprep.subr.bf16.mxu0 0
  %228 = vmatpush1.bf16.msra.mxu0 %v212
  %229 = vmatprep.subr.bf16.mxu0 0
  %230 = vmatpush1.bf16.msra.mxu0 %v211
  %231 = vmatprep.subr.bf16.mxu0 0
  %232 = vmatpush1.bf16.msra.mxu0 %v210
  %233 = vmatprep.subr.bf16.mxu0 0
  %234 = vmatpush1.bf16.msra.mxu0 %v209
  %235 = vmatprep.subr.bf16.mxu0 0
  %236 = vmatpush1.bf16.msra.mxu0 %v208
  %237 = vmatprep.subr.bf16.mxu0 0
  %238 = vmatpush1.bf16.msra.mxu0 %v207
  %239 = vmatprep.subr.bf16.mxu0 0
  %240 = vmatpush2.bf16.msra.mxu0 0
  %241 = vmatprep.subr.bf16.mxu0 0
  %242 = vmatpush2.bf16.msra.mxu0 0
  %243 = vmatprep.subr.bf16.mxu0 0
  %244 = vmatpush2.bf16.msra.mxu0 0
  %245 = vmatprep.subr.bf16.mxu0 0
  %246 = vmatpush2.bf16.msra.mxu0 0
  %247 = vmatprep.subr.bf16.mxu0 0
  %248 = vmatpush2.bf16.msra.mxu0 0
  %249 = vmatprep.subr.bf16.mxu0 0
  %250 = vmatpush2.bf16.msra.mxu0 0
  %251 = vmatprep.subr.bf16.mxu0 0
  %252 = vmatpush2.bf16.msra.mxu0 0
  %253 = vmatprep.subr.bf16.mxu0 0
  %254 = vmatpush2.bf16.msra.mxu0 0
  %255 = vmatprep.mubr.bf16.mxu0 0
  %256 = vmatmul.mubr.bf16.gmra.mxu0 %v143
  %v257 = vpop.f32.mrf.mxu0
  %v258 = vadd.f32 %v77, %v257
  %v259 = vpop.f32.mrf.mxu0
  %v260 = vpop.f32.mrf.mxu0
  %v261 = vadd.f32 %v77, %v260
  %v262 = vpop.f32.mrf.mxu0
  %263 = vmatprep.mubr.bf16.mxu0 0
  %264 = vmatmul.mubr.bf16.gmra.mxu0 %v144
  %v265 = vpop.f32.mrf.mxu0
  %v266 = vadd.f32 %v77, %v265
  %v267 = vpop.f32.mrf.mxu0
  %v268 = vpop.f32.mrf.mxu0
  %v269 = vadd.f32 %v77, %v268
  %v270 = vpop.f32.mrf.mxu0
  %271 = vmatprep.mubr.bf16.mxu0 0
  %272 = vmatmul.mubr.bf16.gmra.mxu0 %v145
  %v273 = vpop.f32.mrf.mxu0
  %v274 = vadd.f32 %v77, %v273
  %v275 = vpop.f32.mrf.mxu0
  %v276 = vpop.f32.mrf.mxu0
  %v277 = vadd.f32 %v77, %v276
  %v278 = vpop.f32.mrf.mxu0
  %279 = vmatprep.mubr.bf16.mxu0 0
  %280 = vmatmul.mubr.bf16.gmra.mxu0 %v146
  %v281 = vpop.f32.mrf.mxu0
  %v282 = vadd.f32 %v77, %v281
  %v283 = vpop.f32.mrf.mxu0
  %v284 = vpop.f32.mrf.mxu0
  %v285 = vadd.f32 %v77, %v284
  %v286 = vpop.f32.mrf.mxu0
  %287 = vmatprep.mubr.bf16.mxu0 0
  %288 = vmatmul.mubr.bf16.gmra.mxu0 %v147
  %v289 = vpop.f32.mrf.mxu0
  %v290 = vadd.f32 %v77, %v289
  %v291 = vpop.f32.mrf.mxu0
  %v292 = vpop.f32.mrf.mxu0
  %v293 = vadd.f32 %v77, %v292
  %v294 = vpop.f32.mrf.mxu0
  %295 = vmatprep.mubr.bf16.mxu0 0
  %296 = vmatmul.mubr.bf16.gmra.mxu0 %v148
  %v297 = vpop.f32.mrf.mxu0
  %v298 = vadd.f32 %v77, %v297
  %v299 = vpop.f32.mrf.mxu0
  %v300 = vpop.f32.mrf.mxu0
  %v301 = vadd.f32 %v77, %v300
  %v302 = vpop.f32.mrf.mxu0
  %303 = vmatprep.mubr.bf16.mxu0 0
  %304 = vmatmul.mubr.bf16.gmra.mxu0 %v149
  %v305 = vpop.f32.mrf.mxu0
  %v306 = vadd.f32 %v77, %v305
  %v307 = vpop.f32.mrf.mxu0
  %v308 = vpop.f32.mrf.mxu0
  %v309 = vadd.f32 %v77, %v308
  %v310 = vpop.f32.mrf.mxu0
  %311 = vmatprep.mubr.bf16.mxu0 0
  %312 = vmatmul.mubr.bf16.gmra.mxu0 %v150
  %v313 = vpop.f32.mrf.mxu0
  %v314 = vadd.f32 %v77, %v313
  %v315 = vpop.f32.mrf.mxu0
  %v316 = vpop.f32.mrf.mxu0
  %v317 = vadd.f32 %v77, %v316
  %v318 = vpop.f32.mrf.mxu0
  %319 = vmatprep.mubr.bf16.mxu0 0
  %320 = vmatmul.mubr.bf16.gmra.mxu0 %v151
  %v321 = vpop.f32.mrf.mxu0
  %v322 = vadd.f32 %v77, %v321
  %v323 = vpop.f32.mrf.mxu0
  %v324 = vpop.f32.mrf.mxu0
  %v325 = vadd.f32 %v77, %v324
  %v326 = vpop.f32.mrf.mxu0
  %327 = vmatprep.mubr.bf16.mxu0 0
  %328 = vmatmul.mubr.bf16.gmra.mxu0 %v152
  %v329 = vpop.f32.mrf.mxu0
  %v330 = vadd.f32 %v77, %v329
  %v331 = vpop.f32.mrf.mxu0
  %v332 = vpop.f32.mrf.mxu0
  %v333 = vadd.f32 %v77, %v332
  %v334 = vpop.f32.mrf.mxu0
  %335 = vmatprep.mubr.bf16.mxu0 0
  %336 = vmatmul.mubr.bf16.gmra.mxu0 %v153
  %v337 = vpop.f32.mrf.mxu0
  %v338 = vadd.f32 %v77, %v337
  %v339 = vpop.f32.mrf.mxu0
  %v340 = vpop.f32.mrf.mxu0
  %v341 = vadd.f32 %v77, %v340
  %v342 = vpop.f32.mrf.mxu0
  %343 = vmatprep.mubr.bf16.mxu0 0
  %344 = vmatmul.mubr.bf16.gmra.mxu0 %v154
  %v345 = vpop.f32.mrf.mxu0
  %v346 = vadd.f32 %v77, %v345
  %v347 = vpop.f32.mrf.mxu0
  %v348 = vpop.f32.mrf.mxu0
  %v349 = vadd.f32 %v77, %v348
  %v350 = vpop.f32.mrf.mxu0
  %351 = vmatprep.mubr.bf16.mxu0 0
  %352 = vmatmul.mubr.bf16.gmra.mxu0 %v155
  %v353 = vpop.f32.mrf.mxu0
  %v354 = vadd.f32 %v77, %v353
  %v355 = vpop.f32.mrf.mxu0
  %v356 = vpop.f32.mrf.mxu0
  %v357 = vadd.f32 %v77, %v356
  %v358 = vpop.f32.mrf.mxu0
  %359 = vmatprep.mubr.bf16.mxu0 0
  %360 = vmatmul.mubr.bf16.gmra.mxu0 %v156
  %v361 = vpop.f32.mrf.mxu0
  %v362 = vadd.f32 %v77, %v361
  %v363 = vpop.f32.mrf.mxu0
  %v364 = vpop.f32.mrf.mxu0
  %v365 = vadd.f32 %v77, %v364
  %v366 = vpop.f32.mrf.mxu0
  %367 = vmatprep.mubr.bf16.mxu0 0
  %368 = vmatmul.mubr.bf16.gmra.mxu0 %v157
  %v369 = vpop.f32.mrf.mxu0
  %v370 = vadd.f32 %v77, %v369
  %v371 = vpop.f32.mrf.mxu0
  %v372 = vpop.f32.mrf.mxu0
  %v373 = vadd.f32 %v77, %v372
  %v374 = vpop.f32.mrf.mxu0
  %375 = vmatprep.mubr.bf16.mxu0 0
  %376 = vmatmul.mubr.bf16.gmra.mxu0 %v158
  %v377 = vpop.f32.mrf.mxu0
  %v378 = vadd.f32 %v77, %v377
  %v379 = vpop.f32.mrf.mxu0
  %v380 = vpop.f32.mrf.mxu0
  %v381 = vadd.f32 %v77, %v380
  %v382 = vpop.f32.mrf.mxu0
  %383 = vdwg.mxu0
  %vm384 = vcmp.gt.f32.partialorder %v258, 0.0
  %vm385 = vcmp.gt.f32.partialorder %v261, 0.0
  %vm386 = vcmp.gt.f32.partialorder %v266, 0.0
  %vm387 = vcmp.gt.f32.partialorder %v269, 0.0
  %vm388 = vcmp.gt.f32.partialorder %v274, 0.0
  %vm389 = vcmp.gt.f32.partialorder %v277, 0.0
  %vm390 = vcmp.gt.f32.partialorder %v282, 0.0
  %vm391 = vcmp.gt.f32.partialorder %v285, 0.0
  %vm392 = vcmp.gt.f32.partialorder %v290, 0.0
  %vm393 = vcmp.gt.f32.partialorder %v293, 0.0
  %vm394 = vcmp.gt.f32.partialorder %v298, 0.0
  %vm395 = vcmp.gt.f32.partialorder %v301, 0.0
  %vm396 = vcmp.gt.f32.partialorder %v306, 0.0
  %vm397 = vcmp.gt.f32.partialorder %v309, 0.0
  %vm398 = vcmp.gt.f32.partialorder %v314, 0.0
  %vm399 = vcmp.gt.f32.partialorder %v317, 0.0
  %vm400 = vcmp.gt.f32.partialorder %v322, 0.0
  %vm401 = vcmp.gt.f32.partialorder %v325, 0.0
  %vm402 = vcmp.gt.f32.partialorder %v330, 0.0
  %vm403 = vcmp.gt.f32.partialorder %v333, 0.0
  %vm404 = vcmp.gt.f32.partialorder %v338, 0.0
  %vm405 = vcmp.gt.f32.partialorder %v341, 0.0
  %vm406 = vcmp.gt.f32.partialorder %v346, 0.0
  %vm407 = vcmp.gt.f32.partialorder %v349, 0.0
  %vm408 = vcmp.gt.f32.partialorder %v354, 0.0
  %vm409 = vcmp.gt.f32.partialorder %v357, 0.0
  %vm410 = vcmp.gt.f32.partialorder %v362, 0.0
  %vm411 = vcmp.gt.f32.partialorder %v365, 0.0
  %vm412 = vcmp.gt.f32.partialorder %v370, 0.0
  %vm413 = vcmp.gt.f32.partialorder %v373, 0.0
  %vm414 = vcmp.gt.f32.partialorder %v378, 0.0
  %vm415 = vcmp.gt.f32.partialorder %v381, 0.0
  %v416 = vmul.f32 %v258, 0.2
  %v417 = vmul.f32 %v261, 0.2
  %v418 = vmul.f32 %v266, 0.2
  %v419 = vmul.f32 %v269, 0.2
  %v420 = vmul.f32 %v274, 0.2
  %v421 = vmul.f32 %v277, 0.2
  %v422 = vmul.f32 %v282, 0.2
  %v423 = vmul.f32 %v285, 0.2
  %v424 = vmul.f32 %v290, 0.2
  %v425 = vmul.f32 %v293, 0.2
  %v426 = vmul.f32 %v298, 0.2
  %v427 = vmul.f32 %v301, 0.2
  %v428 = vmul.f32 %v306, 0.2
  %v429 = vmul.f32 %v309, 0.2
  %v430 = vmul.f32 %v314, 0.2
  %v431 = vmul.f32 %v317, 0.2
  %v432 = vmul.f32 %v322, 0.2
  %v433 = vmul.f32 %v325, 0.2
  %v434 = vmul.f32 %v330, 0.2
  %v435 = vmul.f32 %v333, 0.2
  %v436 = vmul.f32 %v338, 0.2
  %v437 = vmul.f32 %v341, 0.2
  %v438 = vmul.f32 %v346, 0.2
  %v439 = vmul.f32 %v349, 0.2
  %v440 = vmul.f32 %v354, 0.2
  %v441 = vmul.f32 %v357, 0.2
  %v442 = vmul.f32 %v362, 0.2
  %v443 = vmul.f32 %v365, 0.2
  %v444 = vmul.f32 %v370, 0.2
  %v445 = vmul.f32 %v373, 0.2
  %v446 = vmul.f32 %v378, 0.2
  %v447 = vmul.f32 %v381, 0.2
  %v448 = vsel %vm384, %v258, %v416
  %v449 = vsel %vm385, %v261, %v417
  %v450 = vsel %vm386, %v266, %v418
  %v451 = vsel %vm387, %v269, %v419
  %v452 = vsel %vm388, %v274, %v420
  %v453 = vsel %vm389, %v277, %v421
  %v454 = vsel %vm390, %v282, %v422
  %v455 = vsel %vm391, %v285, %v423
  %v456 = vsel %vm392, %v290, %v424
  %v457 = vsel %vm393, %v293, %v425
  %v458 = vsel %vm394, %v298, %v426
  %v459 = vsel %vm395, %v301, %v427
  %v460 = vsel %vm396, %v306, %v428
  %v461 = vsel %vm397, %v309, %v429
  %v462 = vsel %vm398, %v314, %v430
  %v463 = vsel %vm399, %v317, %v431
  %v464 = vsel %vm400, %v322, %v432
  %v465 = vsel %vm401, %v325, %v433
  %v466 = vsel %vm402, %v330, %v434
  %v467 = vsel %vm403, %v333, %v435
  %v468 = vsel %vm404, %v338, %v436
  %v469 = vsel %vm405, %v341, %v437
  %v470 = vsel %vm406, %v346, %v438
  %v471 = vsel %vm407, %v349, %v439
  %v472 = vsel %vm408, %v354, %v440
  %v473 = vsel %vm409, %v357, %v441
  %v474 = vsel %vm410, %v362, %v442
  %v475 = vsel %vm411, %v365, %v443
  %v476 = vsel %vm412, %v370, %v444
  %v477 = vsel %vm413, %v373, %v445
  %v478 = vsel %vm414, %v378, %v446
  %v479 = vsel %vm415, %v381, %v447
  %v480 = vlaneseq
  %v481 = vand.u32 %v480, 127
  %v482 = vld [vmem:[%s1] sm:$0xf]
  %v483 = vld [vmem:[%s1 + $0x4] sm:$0xf]
  %v484 = vld [vmem:[%s1 + $0x8] sm:$0xf]
  %v485 = vld [vmem:[%s1 + $0xc] sm:$0xf]
  %v486 = vld [vmem:[%s1 + $0x10] sm:$0xf]
  %v487 = vld [vmem:[%s1 + $0x14] sm:$0xf]
  %v488 = vld [vmem:[%s1 + $0x18] sm:$0xf]
  %v489 = vld [vmem:[%s1 + $0x1c] sm:$0xf]
  %v490 = vld [vmem:[%s1 + $0x20] sm:$0xf]
  %v491 = vld [vmem:[%s1 + $0x24] sm:$0xf]
  %v492 = vld [vmem:[%s1 + $0x28] sm:$0xf]
  %v493 = vld [vmem:[%s1 + $0x2c] sm:$0xf]
  %v494 = vld [vmem:[%s1 + $0x30] sm:$0xf]
  %v495 = vld [vmem:[%s1 + $0x34] sm:$0xf]
  %v496 = vld [vmem:[%s1 + $0x38] sm:$0xf]
  %v497 = vld [vmem:[%s1 + $0x3c] sm:$0xf]
  %v498 = vld [vmem:[%s1 + $0x40] sm:$0xf]
  %v499 = vld [vmem:[%s1 + $0x44] sm:$0xf]
  %v500 = vld [vmem:[%s1 + $0x48] sm:$0xf]
  %v501 = vld [vmem:[%s1 + $0x4c] sm:$0xf]
  %v502 = vld [vmem:[%s1 + $0x50] sm:$0xf]
  %v503 = vld [vmem:[%s1 + $0x54] sm:$0xf]
  %v504 = vld [vmem:[%s1 + $0x58] sm:$0xf]
  %v505 = vld [vmem:[%s1 + $0x5c] sm:$0xf]
  %v506 = vld [vmem:[%s1 + $0x60] sm:$0xf]
  %v507 = vld [vmem:[%s1 + $0x64] sm:$0xf]
  %v508 = vld [vmem:[%s1 + $0x68] sm:$0xf]
  %v509 = vld [vmem:[%s1 + $0x6c] sm:$0xf]
  %v510 = vld [vmem:[%s1 + $0x70] sm:$0xf]
  %v511 = vld [vmem:[%s1 + $0x74] sm:$0xf]
  %v512 = vld [vmem:[%s1 + $0x78] sm:$0xf]
  %v513 = vld [vmem:[%s1 + $0x7c] sm:$0xf]
  %v514 = vunpack.c.l.bf16 %v482
  %v515 = vunpack.c.l.bf16 %v483
  %v516 = vunpack.c.l.bf16 %v484
  %v517 = vunpack.c.l.bf16 %v485
  %v518 = vunpack.c.l.bf16 %v486
  %v519 = vunpack.c.l.bf16 %v487
  %v520 = vunpack.c.l.bf16 %v488
  %v521 = vunpack.c.l.bf16 %v489
  %v522 = vunpack.c.l.bf16 %v490
  %v523 = vunpack.c.l.bf16 %v491
  %v524 = vunpack.c.l.bf16 %v492
  %v525 = vunpack.c.l.bf16 %v493
  %v526 = vunpack.c.l.bf16 %v494
  %v527 = vunpack.c.l.bf16 %v495
  %v528 = vunpack.c.l.bf16 %v496
  %v529 = vunpack.c.l.bf16 %v497
  %v530 = vunpack.c.l.bf16 %v498
  %v531 = vunpack.c.l.bf16 %v499
  %v532 = vunpack.c.l.bf16 %v500
  %v533 = vunpack.c.l.bf16 %v501
  %v534 = vunpack.c.l.bf16 %v502
  %v535 = vunpack.c.l.bf16 %v503
  %v536 = vunpack.c.l.bf16 %v504
  %v537 = vunpack.c.l.bf16 %v505
  %v538 = vunpack.c.l.bf16 %v506
  %v539 = vunpack.c.l.bf16 %v507
  %v540 = vunpack.c.l.bf16 %v508
  %v541 = vunpack.c.l.bf16 %v509
  %v542 = vunpack.c.l.bf16 %v510
  %v543 = vunpack.c.l.bf16 %v511
  %v544 = vunpack.c.l.bf16 %v512
  %v545 = vunpack.c.l.bf16 %v513
  %vm546 = vcmp.lt.s32.totalorder %v481, 64
  %v547 = vxor.u32 %v448, 2147483648
  %v548 = vxor.u32 %v449, 2147483648
  %v549 = vxor.u32 %v450, 2147483648
  %v550 = vxor.u32 %v451, 2147483648
  %v551 = vxor.u32 %v452, 2147483648
  %v552 = vxor.u32 %v453, 2147483648
  %v553 = vxor.u32 %v454, 2147483648
  %v554 = vxor.u32 %v455, 2147483648
  %v555 = vxor.u32 %v456, 2147483648
  %v556 = vxor.u32 %v457, 2147483648
  %v557 = vxor.u32 %v458, 2147483648
  %v558 = vxor.u32 %v459, 2147483648
  %v559 = vxor.u32 %v460, 2147483648
  %v560 = vxor.u32 %v461, 2147483648
  %v561 = vxor.u32 %v462, 2147483648
  %v562 = vxor.u32 %v463, 2147483648
  %v563 = vxor.u32 %v464, 2147483648
  %v564 = vxor.u32 %v465, 2147483648
  %v565 = vxor.u32 %v466, 2147483648
  %v566 = vxor.u32 %v467, 2147483648
  %v567 = vxor.u32 %v468, 2147483648
  %v568 = vxor.u32 %v469, 2147483648
  %v569 = vxor.u32 %v470, 2147483648
  %v570 = vxor.u32 %v471, 2147483648
  %v571 = vxor.u32 %v472, 2147483648
  %v572 = vxor.u32 %v473, 2147483648
  %v573 = vxor.u32 %v474, 2147483648
  %v574 = vxor.u32 %v475, 2147483648
  %v575 = vxor.u32 %v476, 2147483648
  %v576 = vxor.u32 %v477, 2147483648
  %v577 = vxor.u32 %v478, 2147483648
  %v578 = vxor.u32 %v479, 2147483648
  %v579 = vmul.f32 %v547, 1.442695
  %v580 = vpow.pop %v579
  %v581 = vmul.f32 %v548, 1.442695
  %v582 = vpow.pop %v581
  %v583 = vmul.f32 %v549, 1.442695
  %v584 = vpow.pop %v583
  %v585 = vmul.f32 %v550, 1.442695
  %v586 = vpow.pop %v585
  %v587 = vmul.f32 %v551, 1.442695
  %v588 = vpow.pop %v587
  %v589 = vmul.f32 %v552, 1.442695
  %v590 = vpow.pop %v589
  %v591 = vmul.f32 %v553, 1.442695
  %v592 = vpow.pop %v591
  %v593 = vmul.f32 %v554, 1.442695
  %v594 = vpow.pop %v593
  %v595 = vmul.f32 %v555, 1.442695
  %v596 = vpow.pop %v595
  %v597 = vmul.f32 %v556, 1.442695
  %v598 = vpow.pop %v597
  %v599 = vmul.f32 %v557, 1.442695
  %v600 = vpow.pop %v599
  %v601 = vmul.f32 %v558, 1.442695
  %v602 = vpow.pop %v601
  %v603 = vmul.f32 %v559, 1.442695
  %v604 = vpow.pop %v603
  %v605 = vmul.f32 %v560, 1.442695
  %v606 = vpow.pop %v605
  %v607 = vmul.f32 %v561, 1.442695
  %v608 = vpow.pop %v607
  %v609 = vmul.f32 %v562, 1.442695
  %v610 = vpow.pop %v609
  %v611 = vmul.f32 %v563, 1.442695
  %v612 = vpow.pop %v611
  %v613 = vmul.f32 %v564, 1.442695
  %v614 = vpow.pop %v613
  %v615 = vmul.f32 %v565, 1.442695
  %v616 = vpow.pop %v615
  %v617 = vmul.f32 %v566, 1.442695
  %v618 = vpow.pop %v617
  %v619 = vmul.f32 %v567, 1.442695
  %v620 = vpow.pop %v619
  %v621 = vmul.f32 %v568, 1.442695
  %v622 = vpow.pop %v621
  %v623 = vmul.f32 %v569, 1.442695
  %v624 = vpow.pop %v623
  %v625 = vmul.f32 %v570, 1.442695
  %v626 = vpow.pop %v625
  %v627 = vmul.f32 %v571, 1.442695
  %v628 = vpow.pop %v627
  %v629 = vmul.f32 %v572, 1.442695
  %v630 = vpow.pop %v629
  %v631 = vmul.f32 %v573, 1.442695
  %v632 = vpow.pop %v631
  %v633 = vmul.f32 %v574, 1.442695
  %v634 = vpow.pop %v633
  %v635 = vmul.f32 %v575, 1.442695
  %v636 = vpow.pop %v635
  %v637 = vmul.f32 %v576, 1.442695
  %v638 = vpow.pop %v637
  %v639 = vmul.f32 %v577, 1.442695
  %v640 = vpow.pop %v639
  %v641 = vmul.f32 %v578, 1.442695
  %v642 = vpow.pop %v641
  %v643 = vadd.f32 %v580, 1.0
  %v644 = vadd.f32 %v582, 1.0
  %v645 = vadd.f32 %v584, 1.0
  %v646 = vadd.f32 %v586, 1.0
  %v647 = vadd.f32 %v588, 1.0
  %v648 = vadd.f32 %v590, 1.0
  %v649 = vadd.f32 %v592, 1.0
  %v650 = vadd.f32 %v594, 1.0
  %v651 = vadd.f32 %v596, 1.0
  %v652 = vadd.f32 %v598, 1.0
  %v653 = vadd.f32 %v600, 1.0
  %v654 = vadd.f32 %v602, 1.0
  %v655 = vadd.f32 %v604, 1.0
  %v656 = vadd.f32 %v606, 1.0
  %v657 = vadd.f32 %v608, 1.0
  %v658 = vadd.f32 %v610, 1.0
  %v659 = vadd.f32 %v612, 1.0
  %v660 = vadd.f32 %v614, 1.0
  %v661 = vadd.f32 %v616, 1.0
  %v662 = vadd.f32 %v618, 1.0
  %v663 = vadd.f32 %v620, 1.0
  %v664 = vadd.f32 %v622, 1.0
  %v665 = vadd.f32 %v624, 1.0
  %v666 = vadd.f32 %v626, 1.0
  %v667 = vadd.f32 %v628, 1.0
  %v668 = vadd.f32 %v630, 1.0
  %v669 = vadd.f32 %v632, 1.0
  %v670 = vadd.f32 %v634, 1.0
  %v671 = vadd.f32 %v636, 1.0
  %v672 = vadd.f32 %v638, 1.0
  %v673 = vadd.f32 %v640, 1.0
  %v674 = vadd.f32 %v642, 1.0
  %v675 = vrcp.pop %v643
  %v676 = vmul.f32 1.0, %v675
  %v677 = vrcp.pop %v644
  %v678 = vmul.f32 1.0, %v677
  %v679 = vrcp.pop %v645
  %v680 = vmul.f32 1.0, %v679
  %v681 = vrcp.pop %v646
  %v682 = vmul.f32 1.0, %v681
  %v683 = vrcp.pop %v647
  %v684 = vmul.f32 1.0, %v683
  %v685 = vrcp.pop %v648
  %v686 = vmul.f32 1.0, %v685
  %v687 = vrcp.pop %v649
  %v688 = vmul.f32 1.0, %v687
  %v689 = vrcp.pop %v650
  %v690 = vmul.f32 1.0, %v689
  %v691 = vrcp.pop %v651
  %v692 = vmul.f32 1.0, %v691
  %v693 = vrcp.pop %v652
  %v694 = vmul.f32 1.0, %v693
  %v695 = vrcp.pop %v653
  %v696 = vmul.f32 1.0, %v695
  %v697 = vrcp.pop %v654
  %v698 = vmul.f32 1.0, %v697
  %v699 = vrcp.pop %v655
  %v700 = vmul.f32 1.0, %v699
  %v701 = vrcp.pop %v656
  %v702 = vmul.f32 1.0, %v701
  %v703 = vrcp.pop %v657
  %v704 = vmul.f32 1.0, %v703
  %v705 = vrcp.pop %v658
  %v706 = vmul.f32 1.0, %v705
  %v707 = vrcp.pop %v659
  %v708 = vmul.f32 1.0, %v707
  %v709 = vrcp.pop %v660
  %v710 = vmul.f32 1.0, %v709
  %v711 = vrcp.pop %v661
  %v712 = vmul.f32 1.0, %v711
  %v713 = vrcp.pop %v662
  %v714 = vmul.f32 1.0, %v713
  %v715 = vrcp.pop %v663
  %v716 = vmul.f32 1.0, %v715
  %v717 = vrcp.pop %v664
  %v718 = vmul.f32 1.0, %v717
  %v719 = vrcp.pop %v665
  %v720 = vmul.f32 1.0, %v719
  %v721 = vrcp.pop %v666
  %v722 = vmul.f32 1.0, %v721
  %v723 = vrcp.pop %v667
  %v724 = vmul.f32 1.0, %v723
  %v725 = vrcp.pop %v668
  %v726 = vmul.f32 1.0, %v725
  %v727 = vrcp.pop %v669
  %v728 = vmul.f32 1.0, %v727
  %v729 = vrcp.pop %v670
  %v730 = vmul.f32 1.0, %v729
  %v731 = vrcp.pop %v671
  %v732 = vmul.f32 1.0, %v731
  %v733 = vrcp.pop %v672
  %v734 = vmul.f32 1.0, %v733
  %v735 = vrcp.pop %v673
  %v736 = vmul.f32 1.0, %v735
  %v737 = vrcp.pop %v674
  %v738 = vmul.f32 1.0, %v737
  %v739 = vmul.f32 %v514, %v676
  %v740 = vmul.f32 %v515, %v678
  %v741 = vmul.f32 %v516, %v680
  %v742 = vmul.f32 %v517, %v682
  %v743 = vmul.f32 %v518, %v684
  %v744 = vmul.f32 %v519, %v686
  %v745 = vmul.f32 %v520, %v688
  %v746 = vmul.f32 %v521, %v690
  %v747 = vmul.f32 %v522, %v692
  %v748 = vmul.f32 %v523, %v694
  %v749 = vmul.f32 %v524, %v696
  %v750 = vmul.f32 %v525, %v698
  %v751 = vmul.f32 %v526, %v700
  %v752 = vmul.f32 %v527, %v702
  %v753 = vmul.f32 %v528, %v704
  %v754 = vmul.f32 %v529, %v706
  %v755 = vmul.f32 %v530, %v708
  %v756 = vmul.f32 %v531, %v710
  %v757 = vmul.f32 %v532, %v712
  %v758 = vmul.f32 %v533, %v714
  %v759 = vmul.f32 %v534, %v716
  %v760 = vmul.f32 %v535, %v718
  %v761 = vmul.f32 %v536, %v720
  %v762 = vmul.f32 %v537, %v722
  %v763 = vmul.f32 %v538, %v724
  %v764 = vmul.f32 %v539, %v726
  %v765 = vmul.f32 %v540, %v728
  %v766 = vmul.f32 %v541, %v730
  %v767 = vmul.f32 %v542, %v732
  %v768 = vmul.f32 %v543, %v734
  %v769 = vmul.f32 %v544, %v736
  %v770 = vmul.f32 %v545, %v738
  %v771 = vsel %vm546, %v448, %v739
  %v772 = vsel %vm546, %v449, %v740
  %v773 = vsel %vm546, %v450, %v741
  %v774 = vsel %vm546, %v451, %v742
  %v775 = vsel %vm546, %v452, %v743
  %v776 = vsel %vm546, %v453, %v744
  %v777 = vsel %vm546, %v454, %v745
  %v778 = vsel %vm546, %v455, %v746
  %v779 = vsel %vm546, %v456, %v747
  %v780 = vsel %vm546, %v457, %v748
  %v781 = vsel %vm546, %v458, %v749
  %v782 = vsel %vm546, %v459, %v750
  %v783 = vsel %vm546, %v460, %v751
  %v784 = vsel %vm546, %v461, %v752
  %v785 = vsel %vm546, %v462, %v753
  %v786 = vsel %vm546, %v463, %v754
  %v787 = vsel %vm546, %v464, %v755
  %v788 = vsel %vm546, %v465, %v756
  %v789 = vsel %vm546, %v466, %v757
  %v790 = vsel %vm546, %v467, %v758
  %v791 = vsel %vm546, %v468, %v759
  %v792 = vsel %vm546, %v469, %v760
  %v793 = vsel %vm546, %v470, %v761
  %v794 = vsel %vm546, %v471, %v762
  %v795 = vsel %vm546, %v472, %v763
  %v796 = vsel %vm546, %v473, %v764
  %v797 = vsel %vm546, %v474, %v765
  %v798 = vsel %vm546, %v475, %v766
  %v799 = vsel %vm546, %v476, %v767
  %v800 = vsel %vm546, %v477, %v768
  %v801 = vsel %vm546, %v478, %v769
  %v802 = vsel %vm546, %v479, %v770
  %v803 = vpack.c.bf16 %v772, %v771
  %v804 = vpack.c.bf16 %v774, %v773
  %v805 = vpack.c.bf16 %v776, %v775
  %v806 = vpack.c.bf16 %v778, %v777
  %v807 = vpack.c.bf16 %v780, %v779
  %v808 = vpack.c.bf16 %v782, %v781
  %v809 = vpack.c.bf16 %v784, %v783
  %v810 = vpack.c.bf16 %v786, %v785
  %v811 = vpack.c.bf16 %v788, %v787
  %v812 = vpack.c.bf16 %v790, %v789
  %v813 = vpack.c.bf16 %v792, %v791
  %v814 = vpack.c.bf16 %v794, %v793
  %v815 = vpack.c.bf16 %v796, %v795
  %v816 = vpack.c.bf16 %v798, %v797
  %v817 = vpack.c.bf16 %v800, %v799
  %v818 = vpack.c.bf16 %v802, %v801
  %v819 = vld [vmem:[%s4] sm:$0xf]
  %v820 = vld [vmem:[%s4 + $0x4] sm:$0xf]
  %v821 = vld [vmem:[%s4 + $0x8] sm:$0xf]
  %v822 = vld [vmem:[%s4 + $0xc] sm:$0xf]
  %v823 = vld [vmem:[%s4 + $0x10] sm:$0xf]
  %v824 = vld [vmem:[%s4 + $0x14] sm:$0xf]
  %v825 = vld [vmem:[%s4 + $0x18] sm:$0xf]
  %v826 = vld [vmem:[%s4 + $0x1c] sm:$0xf]
  %v827 = vld [vmem:[%s4 + $0x20] sm:$0xf]
  %v828 = vld [vmem:[%s4 + $0x24] sm:$0xf]
  %v829 = vld [vmem:[%s4 + $0x28] sm:$0xf]
  %v830 = vld [vmem:[%s4 + $0x2c] sm:$0xf]
  %v831 = vld [vmem:[%s4 + $0x30] sm:$0xf]
  %v832 = vld [vmem:[%s4 + $0x34] sm:$0xf]
  %v833 = vld [vmem:[%s4 + $0x38] sm:$0xf]
  %v834 = vld [vmem:[%s4 + $0x3c] sm:$0xf]
  %v835 = vld [vmem:[%s5] sm:$0x1]
  %v837 = vlaneseq
  %v838 = vshrl.u32 %v837, 7
  %v839 = vsub.s32 0, %v838
  %v840 = vrot.slane %v835, %v839
  %v858 = vunpack.c.l.b16 %v819
  %v859 = vunpack.c.l.b16 %v820
  %v860 = vunpack.c.l.b16 %v821
  %v861 = vunpack.c.l.b16 %v822
  %v862 = vunpack.c.l.b16 %v823
  %v863 = vunpack.c.l.b16 %v824
  %v864 = vunpack.c.l.b16 %v825
  %v865 = vunpack.c.l.b16 %v826
  %v866 = vunpack.c.l.b16 %v827
  %v867 = vunpack.c.l.b16 %v828
  %v868 = vunpack.c.l.b16 %v829
  %v869 = vunpack.c.l.b16 %v830
  %v870 = vunpack.c.l.b16 %v831
  %v871 = vunpack.c.l.b16 %v832
  %v872 = vunpack.c.l.b16 %v833
  %v873 = vunpack.c.l.b16 %v834
  %v874 = vpack.c.b16 %v859, %v858
  %v875 = vpack.c.b16 %v861, %v860
  %v876 = vpack.c.b16 %v863, %v862
  %v877 = vpack.c.b16 %v865, %v864
  %v878 = vpack.c.b16 %v867, %v866
  %v879 = vpack.c.b16 %v869, %v868
  %v880 = vpack.c.b16 %v871, %v870
  %v881 = vpack.c.b16 %v873, %v872
  %890 = vmatprep.subr.bf16.mxu0 0
  %891 = vmatpush1.bf16.msra.mxu0 %v881
  %892 = vmatprep.subr.bf16.mxu0 0
  %893 = vmatpush1.bf16.msra.mxu0 %v880
  %894 = vmatprep.subr.bf16.mxu0 0
  %895 = vmatpush1.bf16.msra.mxu0 %v879
  %896 = vmatprep.subr.bf16.mxu0 0
  %897 = vmatpush1.bf16.msra.mxu0 %v878
  %898 = vmatprep.subr.bf16.mxu0 0
  %899 = vmatpush1.bf16.msra.mxu0 %v877
  %900 = vmatprep.subr.bf16.mxu0 0
  %901 = vmatpush1.bf16.msra.mxu0 %v876
  %902 = vmatprep.subr.bf16.mxu0 0
  %903 = vmatpush1.bf16.msra.mxu0 %v875
  %904 = vmatprep.subr.bf16.mxu0 0
  %905 = vmatpush1.bf16.msra.mxu0 %v874
  %906 = vmatprep.subr.bf16.mxu0 0
  %907 = vmatpush2.bf16.msra.mxu0 0
  %908 = vmatprep.subr.bf16.mxu0 0
  %909 = vmatpush2.bf16.msra.mxu0 0
  %910 = vmatprep.subr.bf16.mxu0 0
  %911 = vmatpush2.bf16.msra.mxu0 0
  %912 = vmatprep.subr.bf16.mxu0 0
  %913 = vmatpush2.bf16.msra.mxu0 0
  %914 = vmatprep.subr.bf16.mxu0 0
  %915 = vmatpush2.bf16.msra.mxu0 0
  %916 = vmatprep.subr.bf16.mxu0 0
  %917 = vmatpush2.bf16.msra.mxu0 0
  %918 = vmatprep.subr.bf16.mxu0 0
  %919 = vmatpush2.bf16.msra.mxu0 0
  %920 = vmatprep.subr.bf16.mxu0 0
  %921 = vmatpush2.bf16.msra.mxu0 0
  %922 = vmatprep.mubr.bf16.mxu0 0
  %923 = vmatmul.mubr.bf16.gmra.mxu0 %v803
  %v924 = vpop.f32.mrf.mxu0
  %v925 = vadd.f32 %v840, %v924
  %v926 = vpop.f32.mrf.mxu0
  %v927 = vpop.f32.mrf.mxu0
  %v928 = vadd.f32 %v840, %v927
  %v929 = vpop.f32.mrf.mxu0
  %930 = vmatprep.mubr.bf16.mxu0 0
  %931 = vmatmul.mubr.bf16.gmra.mxu0 %v804
  %v932 = vpop.f32.mrf.mxu0
  %v933 = vadd.f32 %v840, %v932
  %v934 = vpop.f32.mrf.mxu0
  %v935 = vpop.f32.mrf.mxu0
  %v936 = vadd.f32 %v840, %v935
  %v937 = vpop.f32.mrf.mxu0
  %938 = vmatprep.mubr.bf16.mxu0 0
  %939 = vmatmul.mubr.bf16.gmra.mxu0 %v805
  %v940 = vpop.f32.mrf.mxu0
  %v941 = vadd.f32 %v840, %v940
  %v942 = vpop.f32.mrf.mxu0
  %v943 = vpop.f32.mrf.mxu0
  %v944 = vadd.f32 %v840, %v943
  %v945 = vpop.f32.mrf.mxu0
  %946 = vmatprep.mubr.bf16.mxu0 0
  %947 = vmatmul.mubr.bf16.gmra.mxu0 %v806
  %v948 = vpop.f32.mrf.mxu0
  %v949 = vadd.f32 %v840, %v948
  %v950 = vpop.f32.mrf.mxu0
  %v951 = vpop.f32.mrf.mxu0
  %v952 = vadd.f32 %v840, %v951
  %v953 = vpop.f32.mrf.mxu0
  %954 = vmatprep.mubr.bf16.mxu0 0
  %955 = vmatmul.mubr.bf16.gmra.mxu0 %v807
  %v956 = vpop.f32.mrf.mxu0
  %v957 = vadd.f32 %v840, %v956
  %v958 = vpop.f32.mrf.mxu0
  %v959 = vpop.f32.mrf.mxu0
  %v960 = vadd.f32 %v840, %v959
  %v961 = vpop.f32.mrf.mxu0
  %962 = vmatprep.mubr.bf16.mxu0 0
  %963 = vmatmul.mubr.bf16.gmra.mxu0 %v808
  %v964 = vpop.f32.mrf.mxu0
  %v965 = vadd.f32 %v840, %v964
  %v966 = vpop.f32.mrf.mxu0
  %v967 = vpop.f32.mrf.mxu0
  %v968 = vadd.f32 %v840, %v967
  %v969 = vpop.f32.mrf.mxu0
  %970 = vmatprep.mubr.bf16.mxu0 0
  %971 = vmatmul.mubr.bf16.gmra.mxu0 %v809
  %v972 = vpop.f32.mrf.mxu0
  %v973 = vadd.f32 %v840, %v972
  %v974 = vpop.f32.mrf.mxu0
  %v975 = vpop.f32.mrf.mxu0
  %v976 = vadd.f32 %v840, %v975
  %v977 = vpop.f32.mrf.mxu0
  %978 = vmatprep.mubr.bf16.mxu0 0
  %979 = vmatmul.mubr.bf16.gmra.mxu0 %v810
  %v980 = vpop.f32.mrf.mxu0
  %v981 = vadd.f32 %v840, %v980
  %v982 = vpop.f32.mrf.mxu0
  %v983 = vpop.f32.mrf.mxu0
  %v984 = vadd.f32 %v840, %v983
  %v985 = vpop.f32.mrf.mxu0
  %986 = vmatprep.mubr.bf16.mxu0 0
  %987 = vmatmul.mubr.bf16.gmra.mxu0 %v811
  %v988 = vpop.f32.mrf.mxu0
  %v989 = vadd.f32 %v840, %v988
  %v990 = vpop.f32.mrf.mxu0
  %v991 = vpop.f32.mrf.mxu0
  %v992 = vadd.f32 %v840, %v991
  %v993 = vpop.f32.mrf.mxu0
  %994 = vmatprep.mubr.bf16.mxu0 0
  %995 = vmatmul.mubr.bf16.gmra.mxu0 %v812
  %v996 = vpop.f32.mrf.mxu0
  %v997 = vadd.f32 %v840, %v996
  %v998 = vpop.f32.mrf.mxu0
  %v999 = vpop.f32.mrf.mxu0
  %v1000 = vadd.f32 %v840, %v999
  %v1001 = vpop.f32.mrf.mxu0
  %1002 = vmatprep.mubr.bf16.mxu0 0
  %1003 = vmatmul.mubr.bf16.gmra.mxu0 %v813
  %v1004 = vpop.f32.mrf.mxu0
  %v1005 = vadd.f32 %v840, %v1004
  %v1006 = vpop.f32.mrf.mxu0
  %v1007 = vpop.f32.mrf.mxu0
  %v1008 = vadd.f32 %v840, %v1007
  %v1009 = vpop.f32.mrf.mxu0
  %1010 = vmatprep.mubr.bf16.mxu0 0
  %1011 = vmatmul.mubr.bf16.gmra.mxu0 %v814
  %v1012 = vpop.f32.mrf.mxu0
  %v1013 = vadd.f32 %v840, %v1012
  %v1014 = vpop.f32.mrf.mxu0
  %v1015 = vpop.f32.mrf.mxu0
  %v1016 = vadd.f32 %v840, %v1015
  %v1017 = vpop.f32.mrf.mxu0
  %1018 = vmatprep.mubr.bf16.mxu0 0
  %1019 = vmatmul.mubr.bf16.gmra.mxu0 %v815
  %v1020 = vpop.f32.mrf.mxu0
  %v1021 = vadd.f32 %v840, %v1020
  %v1022 = vpop.f32.mrf.mxu0
  %v1023 = vpop.f32.mrf.mxu0
  %v1024 = vadd.f32 %v840, %v1023
  %v1025 = vpop.f32.mrf.mxu0
  %1026 = vmatprep.mubr.bf16.mxu0 0
  %1027 = vmatmul.mubr.bf16.gmra.mxu0 %v816
  %v1028 = vpop.f32.mrf.mxu0
  %v1029 = vadd.f32 %v840, %v1028
  %v1030 = vpop.f32.mrf.mxu0
  %v1031 = vpop.f32.mrf.mxu0
  %v1032 = vadd.f32 %v840, %v1031
  %v1033 = vpop.f32.mrf.mxu0
  %1034 = vmatprep.mubr.bf16.mxu0 0
  %1035 = vmatmul.mubr.bf16.gmra.mxu0 %v817
  %v1036 = vpop.f32.mrf.mxu0
  %v1037 = vadd.f32 %v840, %v1036
  %v1038 = vpop.f32.mrf.mxu0
  %v1039 = vpop.f32.mrf.mxu0
  %v1040 = vadd.f32 %v840, %v1039
  %v1041 = vpop.f32.mrf.mxu0
  %1042 = vmatprep.mubr.bf16.mxu0 0
  %1043 = vmatmul.mubr.bf16.gmra.mxu0 %v818
  %v1044 = vpop.f32.mrf.mxu0
  %v1045 = vadd.f32 %v840, %v1044
  %v1046 = vpop.f32.mrf.mxu0
  %v1047 = vpop.f32.mrf.mxu0
  %v1048 = vadd.f32 %v840, %v1047
  %v1049 = vpop.f32.mrf.mxu0
  %1050 = vdwg.mxu0
  %vm1051 = vcmp.lt.s32.totalorder %v481, 16
  %v1052 = vsel %vm1051, %v925, -1e+30
  %v1053 = vsel %vm1051, %v928, -1e+30
  %v1054 = vsel %vm1051, %v933, -1e+30
  %v1055 = vsel %vm1051, %v936, -1e+30
  %v1056 = vsel %vm1051, %v941, -1e+30
  %v1057 = vsel %vm1051, %v944, -1e+30
  %v1058 = vsel %vm1051, %v949, -1e+30
  %v1059 = vsel %vm1051, %v952, -1e+30
  %v1060 = vsel %vm1051, %v957, -1e+30
  %v1061 = vsel %vm1051, %v960, -1e+30
  %v1062 = vsel %vm1051, %v965, -1e+30
  %v1063 = vsel %vm1051, %v968, -1e+30
  %v1064 = vsel %vm1051, %v973, -1e+30
  %v1065 = vsel %vm1051, %v976, -1e+30
  %v1066 = vsel %vm1051, %v981, -1e+30
  %v1067 = vsel %vm1051, %v984, -1e+30
  %v1068 = vsel %vm1051, %v989, -1e+30
  %v1069 = vsel %vm1051, %v992, -1e+30
  %v1070 = vsel %vm1051, %v997, -1e+30
  %v1071 = vsel %vm1051, %v1000, -1e+30
  %v1072 = vsel %vm1051, %v1005, -1e+30
  %v1073 = vsel %vm1051, %v1008, -1e+30
  %v1074 = vsel %vm1051, %v1013, -1e+30
  %v1075 = vsel %vm1051, %v1016, -1e+30
  %v1076 = vsel %vm1051, %v1021, -1e+30
  %v1077 = vsel %vm1051, %v1024, -1e+30
  %v1078 = vsel %vm1051, %v1029, -1e+30
  %v1079 = vsel %vm1051, %v1032, -1e+30
  %v1080 = vsel %vm1051, %v1037, -1e+30
  %v1081 = vsel %vm1051, %v1040, -1e+30
  %v1082 = vsel %vm1051, %v1045, -1e+30
  %v1083 = vsel %vm1051, %v1048, -1e+30
  %1084 = vmax.xlane.f32.xlu0 %v1052
  %v1085 = vpop.xlane.xlu0 %1084
  %1086 = vmax.xlane.f32.xlu0 %v1053
  %v1087 = vpop.xlane.xlu0 %1086
  %1088 = vmax.xlane.f32.xlu0 %v1054
  %v1089 = vpop.xlane.xlu0 %1088
  %1090 = vmax.xlane.f32.xlu0 %v1055
  %v1091 = vpop.xlane.xlu0 %1090
  %1092 = vmax.xlane.f32.xlu0 %v1056
  %v1093 = vpop.xlane.xlu0 %1092
  %1094 = vmax.xlane.f32.xlu0 %v1057
  %v1095 = vpop.xlane.xlu0 %1094
  %1096 = vmax.xlane.f32.xlu0 %v1058
  %v1097 = vpop.xlane.xlu0 %1096
  %1098 = vmax.xlane.f32.xlu0 %v1059
  %v1099 = vpop.xlane.xlu0 %1098
  %1100 = vmax.xlane.f32.xlu0 %v1060
  %v1101 = vpop.xlane.xlu0 %1100
  %1102 = vmax.xlane.f32.xlu0 %v1061
  %v1103 = vpop.xlane.xlu0 %1102
  %1104 = vmax.xlane.f32.xlu0 %v1062
  %v1105 = vpop.xlane.xlu0 %1104
  %1106 = vmax.xlane.f32.xlu0 %v1063
  %v1107 = vpop.xlane.xlu0 %1106
  %1108 = vmax.xlane.f32.xlu0 %v1064
  %v1109 = vpop.xlane.xlu0 %1108
  %1110 = vmax.xlane.f32.xlu0 %v1065
  %v1111 = vpop.xlane.xlu0 %1110
  %1112 = vmax.xlane.f32.xlu0 %v1066
  %v1113 = vpop.xlane.xlu0 %1112
  %1114 = vmax.xlane.f32.xlu0 %v1067
  %v1115 = vpop.xlane.xlu0 %1114
  %1116 = vmax.xlane.f32.xlu0 %v1068
  %v1117 = vpop.xlane.xlu0 %1116
  %1118 = vmax.xlane.f32.xlu0 %v1069
  %v1119 = vpop.xlane.xlu0 %1118
  %1120 = vmax.xlane.f32.xlu0 %v1070
  %v1121 = vpop.xlane.xlu0 %1120
  %1122 = vmax.xlane.f32.xlu0 %v1071
  %v1123 = vpop.xlane.xlu0 %1122
  %1124 = vmax.xlane.f32.xlu0 %v1072
  %v1125 = vpop.xlane.xlu0 %1124
  %1126 = vmax.xlane.f32.xlu0 %v1073
  %v1127 = vpop.xlane.xlu0 %1126
  %1128 = vmax.xlane.f32.xlu0 %v1074
  %v1129 = vpop.xlane.xlu0 %1128
  %1130 = vmax.xlane.f32.xlu0 %v1075
  %v1131 = vpop.xlane.xlu0 %1130
  %1132 = vmax.xlane.f32.xlu0 %v1076
  %v1133 = vpop.xlane.xlu0 %1132
  %1134 = vmax.xlane.f32.xlu0 %v1077
  %v1135 = vpop.xlane.xlu0 %1134
  %1136 = vmax.xlane.f32.xlu0 %v1078
  %v1137 = vpop.xlane.xlu0 %1136
  %1138 = vmax.xlane.f32.xlu0 %v1079
  %v1139 = vpop.xlane.xlu0 %1138
  %1140 = vmax.xlane.f32.xlu0 %v1080
  %v1141 = vpop.xlane.xlu0 %1140
  %1142 = vmax.xlane.f32.xlu0 %v1081
  %v1143 = vpop.xlane.xlu0 %1142
  %1144 = vmax.xlane.f32.xlu0 %v1082
  %v1145 = vpop.xlane.xlu0 %1144
  %1146 = vmax.xlane.f32.xlu0 %v1083
  %v1147 = vpop.xlane.xlu0 %1146
  %v1148 = vsub.f32 %v1052, %v1085
  %v1149 = vsub.f32 %v1053, %v1087
  %v1150 = vsub.f32 %v1054, %v1089
  %v1151 = vsub.f32 %v1055, %v1091
  %v1152 = vsub.f32 %v1056, %v1093
  %v1153 = vsub.f32 %v1057, %v1095
  %v1154 = vsub.f32 %v1058, %v1097
  %v1155 = vsub.f32 %v1059, %v1099
  %v1156 = vsub.f32 %v1060, %v1101
  %v1157 = vsub.f32 %v1061, %v1103
  %v1158 = vsub.f32 %v1062, %v1105
  %v1159 = vsub.f32 %v1063, %v1107
  %v1160 = vsub.f32 %v1064, %v1109
  %v1161 = vsub.f32 %v1065, %v1111
  %v1162 = vsub.f32 %v1066, %v1113
  %v1163 = vsub.f32 %v1067, %v1115
  %v1164 = vsub.f32 %v1068, %v1117
  %v1165 = vsub.f32 %v1069, %v1119
  %v1166 = vsub.f32 %v1070, %v1121
  %v1167 = vsub.f32 %v1071, %v1123
  %v1168 = vsub.f32 %v1072, %v1125
  %v1169 = vsub.f32 %v1073, %v1127
  %v1170 = vsub.f32 %v1074, %v1129
  %v1171 = vsub.f32 %v1075, %v1131
  %v1172 = vsub.f32 %v1076, %v1133
  %v1173 = vsub.f32 %v1077, %v1135
  %v1174 = vsub.f32 %v1078, %v1137
  %v1175 = vsub.f32 %v1079, %v1139
  %v1176 = vsub.f32 %v1080, %v1141
  %v1177 = vsub.f32 %v1081, %v1143
  %v1178 = vsub.f32 %v1082, %v1145
  %v1179 = vsub.f32 %v1083, %v1147
  %v1180 = vmul.f32 %v1148, 1.442695
  %v1181 = vpow.pop %v1180
  %v1182 = vmul.f32 %v1149, 1.442695
  %v1183 = vpow.pop %v1182
  %v1184 = vmul.f32 %v1150, 1.442695
  %v1185 = vpow.pop %v1184
  %v1186 = vmul.f32 %v1151, 1.442695
  %v1187 = vpow.pop %v1186
  %v1188 = vmul.f32 %v1152, 1.442695
  %v1189 = vpow.pop %v1188
  %v1190 = vmul.f32 %v1153, 1.442695
  %v1191 = vpow.pop %v1190
  %v1192 = vmul.f32 %v1154, 1.442695
  %v1193 = vpow.pop %v1192
  %v1194 = vmul.f32 %v1155, 1.442695
  %v1195 = vpow.pop %v1194
  %v1196 = vmul.f32 %v1156, 1.442695
  %v1197 = vpow.pop %v1196
  %v1198 = vmul.f32 %v1157, 1.442695
  %v1199 = vpow.pop %v1198
  %v1200 = vmul.f32 %v1158, 1.442695
  %v1201 = vpow.pop %v1200
  %v1202 = vmul.f32 %v1159, 1.442695
  %v1203 = vpow.pop %v1202
  %v1204 = vmul.f32 %v1160, 1.442695
  %v1205 = vpow.pop %v1204
  %v1206 = vmul.f32 %v1161, 1.442695
  %v1207 = vpow.pop %v1206
  %v1208 = vmul.f32 %v1162, 1.442695
  %v1209 = vpow.pop %v1208
  %v1210 = vmul.f32 %v1163, 1.442695
  %v1211 = vpow.pop %v1210
  %v1212 = vmul.f32 %v1164, 1.442695
  %v1213 = vpow.pop %v1212
  %v1214 = vmul.f32 %v1165, 1.442695
  %v1215 = vpow.pop %v1214
  %v1216 = vmul.f32 %v1166, 1.442695
  %v1217 = vpow.pop %v1216
  %v1218 = vmul.f32 %v1167, 1.442695
  %v1219 = vpow.pop %v1218
  %v1220 = vmul.f32 %v1168, 1.442695
  %v1221 = vpow.pop %v1220
  %v1222 = vmul.f32 %v1169, 1.442695
  %v1223 = vpow.pop %v1222
  %v1224 = vmul.f32 %v1170, 1.442695
  %v1225 = vpow.pop %v1224
  %v1226 = vmul.f32 %v1171, 1.442695
  %v1227 = vpow.pop %v1226
  %v1228 = vmul.f32 %v1172, 1.442695
  %v1229 = vpow.pop %v1228
  %v1230 = vmul.f32 %v1173, 1.442695
  %v1231 = vpow.pop %v1230
  %v1232 = vmul.f32 %v1174, 1.442695
  %v1233 = vpow.pop %v1232
  %v1234 = vmul.f32 %v1175, 1.442695
  %v1235 = vpow.pop %v1234
  %v1236 = vmul.f32 %v1176, 1.442695
  %v1237 = vpow.pop %v1236
  %v1238 = vmul.f32 %v1177, 1.442695
  %v1239 = vpow.pop %v1238
  %v1240 = vmul.f32 %v1178, 1.442695
  %v1241 = vpow.pop %v1240
  %v1242 = vmul.f32 %v1179, 1.442695
  %v1243 = vpow.pop %v1242
  %1244 = vadd.xlane.f32.xlu0 %v1181
  %v1245 = vpop.xlane.xlu0 %1244
  %1246 = vadd.xlane.f32.xlu0 %v1183
  %v1247 = vpop.xlane.xlu0 %1246
  %1248 = vadd.xlane.f32.xlu0 %v1185
  %v1249 = vpop.xlane.xlu0 %1248
  %1250 = vadd.xlane.f32.xlu0 %v1187
  %v1251 = vpop.xlane.xlu0 %1250
  %1252 = vadd.xlane.f32.xlu0 %v1189
  %v1253 = vpop.xlane.xlu0 %1252
  %1254 = vadd.xlane.f32.xlu0 %v1191
  %v1255 = vpop.xlane.xlu0 %1254
  %1256 = vadd.xlane.f32.xlu0 %v1193
  %v1257 = vpop.xlane.xlu0 %1256
  %1258 = vadd.xlane.f32.xlu0 %v1195
  %v1259 = vpop.xlane.xlu0 %1258
  %1260 = vadd.xlane.f32.xlu0 %v1197
  %v1261 = vpop.xlane.xlu0 %1260
  %1262 = vadd.xlane.f32.xlu0 %v1199
  %v1263 = vpop.xlane.xlu0 %1262
  %1264 = vadd.xlane.f32.xlu0 %v1201
  %v1265 = vpop.xlane.xlu0 %1264
  %1266 = vadd.xlane.f32.xlu0 %v1203
  %v1267 = vpop.xlane.xlu0 %1266
  %1268 = vadd.xlane.f32.xlu0 %v1205
  %v1269 = vpop.xlane.xlu0 %1268
  %1270 = vadd.xlane.f32.xlu0 %v1207
  %v1271 = vpop.xlane.xlu0 %1270
  %1272 = vadd.xlane.f32.xlu0 %v1209
  %v1273 = vpop.xlane.xlu0 %1272
  %1274 = vadd.xlane.f32.xlu0 %v1211
  %v1275 = vpop.xlane.xlu0 %1274
  %1276 = vadd.xlane.f32.xlu0 %v1213
  %v1277 = vpop.xlane.xlu0 %1276
  %1278 = vadd.xlane.f32.xlu0 %v1215
  %v1279 = vpop.xlane.xlu0 %1278
  %1280 = vadd.xlane.f32.xlu0 %v1217
  %v1281 = vpop.xlane.xlu0 %1280
  %1282 = vadd.xlane.f32.xlu0 %v1219
  %v1283 = vpop.xlane.xlu0 %1282
  %1284 = vadd.xlane.f32.xlu0 %v1221
  %v1285 = vpop.xlane.xlu0 %1284
  %1286 = vadd.xlane.f32.xlu0 %v1223
  %v1287 = vpop.xlane.xlu0 %1286
  %1288 = vadd.xlane.f32.xlu0 %v1225
  %v1289 = vpop.xlane.xlu0 %1288
  %1290 = vadd.xlane.f32.xlu0 %v1227
  %v1291 = vpop.xlane.xlu0 %1290
  %1292 = vadd.xlane.f32.xlu0 %v1229
  %v1293 = vpop.xlane.xlu0 %1292
  %1294 = vadd.xlane.f32.xlu0 %v1231
  %v1295 = vpop.xlane.xlu0 %1294
  %1296 = vadd.xlane.f32.xlu0 %v1233
  %v1297 = vpop.xlane.xlu0 %1296
  %1298 = vadd.xlane.f32.xlu0 %v1235
  %v1299 = vpop.xlane.xlu0 %1298
  %1300 = vadd.xlane.f32.xlu0 %v1237
  %v1301 = vpop.xlane.xlu0 %1300
  %1302 = vadd.xlane.f32.xlu0 %v1239
  %v1303 = vpop.xlane.xlu0 %1302
  %1304 = vadd.xlane.f32.xlu0 %v1241
  %v1305 = vpop.xlane.xlu0 %1304
  %1306 = vadd.xlane.f32.xlu0 %v1243
  %v1307 = vpop.xlane.xlu0 %1306
  %v1308 = vlog2.pop %v1245
  %v1309 = vmul.f32 %v1308, 0.6931472
  %v1310 = vlog2.pop %v1247
  %v1311 = vmul.f32 %v1310, 0.6931472
  %v1312 = vlog2.pop %v1249
  %v1313 = vmul.f32 %v1312, 0.6931472
  %v1314 = vlog2.pop %v1251
  %v1315 = vmul.f32 %v1314, 0.6931472
  %v1316 = vlog2.pop %v1253
  %v1317 = vmul.f32 %v1316, 0.6931472
  %v1318 = vlog2.pop %v1255
  %v1319 = vmul.f32 %v1318, 0.6931472
  %v1320 = vlog2.pop %v1257
  %v1321 = vmul.f32 %v1320, 0.6931472
  %v1322 = vlog2.pop %v1259
  %v1323 = vmul.f32 %v1322, 0.6931472
  %v1324 = vlog2.pop %v1261
  %v1325 = vmul.f32 %v1324, 0.6931472
  %v1326 = vlog2.pop %v1263
  %v1327 = vmul.f32 %v1326, 0.6931472
  %v1328 = vlog2.pop %v1265
  %v1329 = vmul.f32 %v1328, 0.6931472
  %v1330 = vlog2.pop %v1267
  %v1331 = vmul.f32 %v1330, 0.6931472
  %v1332 = vlog2.pop %v1269
  %v1333 = vmul.f32 %v1332, 0.6931472
  %v1334 = vlog2.pop %v1271
  %v1335 = vmul.f32 %v1334, 0.6931472
  %v1336 = vlog2.pop %v1273
  %v1337 = vmul.f32 %v1336, 0.6931472
  %v1338 = vlog2.pop %v1275
  %v1339 = vmul.f32 %v1338, 0.6931472
  %v1340 = vlog2.pop %v1277
  %v1341 = vmul.f32 %v1340, 0.6931472
  %v1342 = vlog2.pop %v1279
  %v1343 = vmul.f32 %v1342, 0.6931472
  %v1344 = vlog2.pop %v1281
  %v1345 = vmul.f32 %v1344, 0.6931472
  %v1346 = vlog2.pop %v1283
  %v1347 = vmul.f32 %v1346, 0.6931472
  %v1348 = vlog2.pop %v1285
  %v1349 = vmul.f32 %v1348, 0.6931472
  %v1350 = vlog2.pop %v1287
  %v1351 = vmul.f32 %v1350, 0.6931472
  %v1352 = vlog2.pop %v1289
  %v1353 = vmul.f32 %v1352, 0.6931472
  %v1354 = vlog2.pop %v1291
  %v1355 = vmul.f32 %v1354, 0.6931472
  %v1356 = vlog2.pop %v1293
  %v1357 = vmul.f32 %v1356, 0.6931472
  %v1358 = vlog2.pop %v1295
  %v1359 = vmul.f32 %v1358, 0.6931472
  %v1360 = vlog2.pop %v1297
  %v1361 = vmul.f32 %v1360, 0.6931472
  %v1362 = vlog2.pop %v1299
  %v1363 = vmul.f32 %v1362, 0.6931472
  %v1364 = vlog2.pop %v1301
  %v1365 = vmul.f32 %v1364, 0.6931472
  %v1366 = vlog2.pop %v1303
  %v1367 = vmul.f32 %v1366, 0.6931472
  %v1368 = vlog2.pop %v1305
  %v1369 = vmul.f32 %v1368, 0.6931472
  %v1370 = vlog2.pop %v1307
  %v1371 = vmul.f32 %v1370, 0.6931472
  %v1372 = vsub.f32 %v1148, %v1309
  %v1373 = vsub.f32 %v1149, %v1311
  %v1374 = vsub.f32 %v1150, %v1313
  %v1375 = vsub.f32 %v1151, %v1315
  %v1376 = vsub.f32 %v1152, %v1317
  %v1377 = vsub.f32 %v1153, %v1319
  %v1378 = vsub.f32 %v1154, %v1321
  %v1379 = vsub.f32 %v1155, %v1323
  %v1380 = vsub.f32 %v1156, %v1325
  %v1381 = vsub.f32 %v1157, %v1327
  %v1382 = vsub.f32 %v1158, %v1329
  %v1383 = vsub.f32 %v1159, %v1331
  %v1384 = vsub.f32 %v1160, %v1333
  %v1385 = vsub.f32 %v1161, %v1335
  %v1386 = vsub.f32 %v1162, %v1337
  %v1387 = vsub.f32 %v1163, %v1339
  %v1388 = vsub.f32 %v1164, %v1341
  %v1389 = vsub.f32 %v1165, %v1343
  %v1390 = vsub.f32 %v1166, %v1345
  %v1391 = vsub.f32 %v1167, %v1347
  %v1392 = vsub.f32 %v1168, %v1349
  %v1393 = vsub.f32 %v1169, %v1351
  %v1394 = vsub.f32 %v1170, %v1353
  %v1395 = vsub.f32 %v1171, %v1355
  %v1396 = vsub.f32 %v1172, %v1357
  %v1397 = vsub.f32 %v1173, %v1359
  %v1398 = vsub.f32 %v1174, %v1361
  %v1399 = vsub.f32 %v1175, %v1363
  %v1400 = vsub.f32 %v1176, %v1365
  %v1401 = vsub.f32 %v1177, %v1367
  %v1402 = vsub.f32 %v1178, %v1369
  %v1403 = vsub.f32 %v1179, %v1371
  %v1404 = vsel %vm1051, %v1372, %v925
  %v1405 = vsel %vm1051, %v1373, %v928
  %v1406 = vsel %vm1051, %v1374, %v933
  %v1407 = vsel %vm1051, %v1375, %v936
  %v1408 = vsel %vm1051, %v1376, %v941
  %v1409 = vsel %vm1051, %v1377, %v944
  %v1410 = vsel %vm1051, %v1378, %v949
  %v1411 = vsel %vm1051, %v1379, %v952
  %v1412 = vsel %vm1051, %v1380, %v957
  %v1413 = vsel %vm1051, %v1381, %v960
  %v1414 = vsel %vm1051, %v1382, %v965
  %v1415 = vsel %vm1051, %v1383, %v968
  %v1416 = vsel %vm1051, %v1384, %v973
  %v1417 = vsel %vm1051, %v1385, %v976
  %v1418 = vsel %vm1051, %v1386, %v981
  %v1419 = vsel %vm1051, %v1387, %v984
  %v1420 = vsel %vm1051, %v1388, %v989
  %v1421 = vsel %vm1051, %v1389, %v992
  %v1422 = vsel %vm1051, %v1390, %v997
  %v1423 = vsel %vm1051, %v1391, %v1000
  %v1424 = vsel %vm1051, %v1392, %v1005
  %v1425 = vsel %vm1051, %v1393, %v1008
  %v1426 = vsel %vm1051, %v1394, %v1013
  %v1427 = vsel %vm1051, %v1395, %v1016
  %v1428 = vsel %vm1051, %v1396, %v1021
  %v1429 = vsel %vm1051, %v1397, %v1024
  %v1430 = vsel %vm1051, %v1398, %v1029
  %v1431 = vsel %vm1051, %v1399, %v1032
  %v1432 = vsel %vm1051, %v1400, %v1037
  %v1433 = vsel %vm1051, %v1401, %v1040
  %v1434 = vsel %vm1051, %v1402, %v1045
  %v1435 = vsel %vm1051, %v1403, %v1048
  %1436 = vst [vmem:[%s6] sm:$0xff] %v1404
  %1437 = vst [vmem:[%s6 + $0x8] sm:$0xff] %v1405
  %1438 = vst [vmem:[%s6 + $0x10] sm:$0xff] %v1406
  %1439 = vst [vmem:[%s6 + $0x18] sm:$0xff] %v1407
  %1440 = vst [vmem:[%s6 + $0x20] sm:$0xff] %v1408
  %1441 = vst [vmem:[%s6 + $0x28] sm:$0xff] %v1409
  %1442 = vst [vmem:[%s6 + $0x30] sm:$0xff] %v1410
  %1443 = vst [vmem:[%s6 + $0x38] sm:$0xff] %v1411
  %1444 = vst [vmem:[%s6 + $0x40] sm:$0xff] %v1412
  %1445 = vst [vmem:[%s6 + $0x48] sm:$0xff] %v1413
  %1446 = vst [vmem:[%s6 + $0x50] sm:$0xff] %v1414
  %1447 = vst [vmem:[%s6 + $0x58] sm:$0xff] %v1415
  %1448 = vst [vmem:[%s6 + $0x60] sm:$0xff] %v1416
  %1449 = vst [vmem:[%s6 + $0x68] sm:$0xff] %v1417
  %1450 = vst [vmem:[%s6 + $0x70] sm:$0xff] %v1418
  %1451 = vst [vmem:[%s6 + $0x78] sm:$0xff] %v1419
  %1452 = vst [vmem:[%s6 + $0x80] sm:$0xff] %v1420
  %1453 = vst [vmem:[%s6 + $0x88] sm:$0xff] %v1421
  %1454 = vst [vmem:[%s6 + $0x90] sm:$0xff] %v1422
  %1455 = vst [vmem:[%s6 + $0x98] sm:$0xff] %v1423
  %1456 = vst [vmem:[%s6 + $0xa0] sm:$0xff] %v1424
  %1457 = vst [vmem:[%s6 + $0xa8] sm:$0xff] %v1425
  %1458 = vst [vmem:[%s6 + $0xb0] sm:$0xff] %v1426
  %1459 = vst [vmem:[%s6 + $0xb8] sm:$0xff] %v1427
  %1460 = vst [vmem:[%s6 + $0xc0] sm:$0xff] %v1428
  %1461 = vst [vmem:[%s6 + $0xc8] sm:$0xff] %v1429
  %1462 = vst [vmem:[%s6 + $0xd0] sm:$0xff] %v1430
  %1463 = vst [vmem:[%s6 + $0xd8] sm:$0xff] %v1431
  %1464 = vst [vmem:[%s6 + $0xe0] sm:$0xff] %v1432
  %1465 = vst [vmem:[%s6 + $0xe8] sm:$0xff] %v1433
  %1466 = vst [vmem:[%s6 + $0xf0] sm:$0xff] %v1434
  %1467 = vst [vmem:[%s6 + $0xf8] sm:$0xff] %v1435
  // Predicated region
  $region26: #{mlp_critic_forward.1} parent=0 // pred_check
    _
  $region27: #{mlp_critic_forward.1} parent=0 // pred_check_branch
    %1469 = sbr.rel (0) target = $region29
  $region28: #{mlp_critic_forward.1} parent=0 // pred_region
    _
  $region29: #{mlp_critic_forward.1} parent=0 // pred_fallthru
    _
  // Predicated region
  $region30: #{mlp_critic_forward.1} parent=0 // pred_check
    _
  $region31: #{mlp_critic_forward.1} parent=0 // pred_check_branch
    %1471 = sbr.rel (0) target = $region33
  $region32: #{mlp_critic_forward.1} parent=0 // pred_region
    _
  $region33: #{mlp_critic_forward.1} parent=0 // pred_fallthru
    _

</llo_original>
